<compile_context>
chip_gen: v5e
topology: v5e:2x2
jax: 0.10.0
libtpu: 0.0.40
codegen_flags: <defaults>
</compile_context>

<pallas_src>
import jax
import jax.numpy as jnp
from jax.experimental import pallas as pl
from jax.experimental.pallas import tpu as pltpu


# ---------------------------------------------------------------------------
# Fused Pallas kernel: all GIN layers + motif mean-pool, single invocation
# ---------------------------------------------------------------------------
def fused_gin_pool_kernel(a_ref, h0_ref, c_ref, w1_ref, b1_ref, w2_ref, b2_ref,
                          p_ref, out_ref):
    """All refs are whole-array VMEM-resident (gridless call). The layer loop
    is a static Python unroll so the scheduler sees the full dependence chain."""
    num_layer = c_ref.shape[0]
    a = a_ref[...]                               # (N_pad, N_pad) bf16 (exact 0/1 counts)
    h = h0_ref[...]                              # (N_pad, E_pad) f32
    for l in range(num_layer):                   # static unroll; L is small (2..5)
        # GIN aggregation: A @ h + C_l   (bf16 operands -> single-pass MXU, f32 acc)
        agg = jnp.dot(a, h.astype(jnp.bfloat16),
                      preferred_element_type=jnp.float32) + c_ref[l]
        # 2-layer MLP; BatchNorm (eval mode) is folded into W2/b2 on the host.
        z = jnp.dot(agg.astype(jnp.bfloat16), w1_ref[l],
                    preferred_element_type=jnp.float32) + b1_ref[l]
        z = jnp.maximum(z, 0.0)
        z = jnp.dot(z.astype(jnp.bfloat16), w2_ref[l],
                    preferred_element_type=jnp.float32) + b2_ref[l]
        # TODO(synk): F.dropout is identity in eval mode; training-mode dropout not implemented.
        # Inter-layer ReLU fused into the producing expression (JK='last': none after last layer).
        h = jnp.maximum(z, 0.0) if l < num_layer - 1 else z
    # Fused motif mean-pool while h is still resident. P already carries
    # 1/counts, so this matmul IS the segment mean (no divide needed).
    out_ref[...] = jnp.dot(p_ref[...], h, preferred_element_type=jnp.float32)


def fused_gin_pool(A, h0, C_stk, W1_stk, b1_stk, W2_stk, b2_stk, P,
                   S_pad, E_pad):
    num_layer, N_pad, _ = C_stk.shape
    flops = (num_layer * (2 * N_pad * N_pad * E_pad             # A @ h
                          + 2 * N_pad * E_pad * (2 * E_pad)     # agg @ W1
                          + 2 * N_pad * (2 * E_pad) * E_pad)    # hid @ W2
             + 2 * S_pad * N_pad * E_pad)                       # P @ h
    bytes_accessed = int(sum(x.size * x.dtype.itemsize
                             for x in (A, h0, C_stk, W1_stk, b1_stk,
                                       W2_stk, b2_stk, P))
                         + S_pad * E_pad * 4)

    vmem_spec = pl.BlockSpec(memory_space=pltpu.MemorySpace.VMEM)
    return pl.pallas_call(
        fused_gin_pool_kernel,
        out_shape=jax.ShapeDtypeStruct((S_pad, E_pad), jnp.float32),
        in_specs=[vmem_spec] * 8,
        out_specs=vmem_spec,
        compiler_params=pltpu.CompilerParams(
            # Explicit (tight) limit: lifts v5e's 16 MiB default scoped VMEM,
            # keeps plenty of headroom under v7x's 64 MiB physical VMEM.
            vmem_limit_bytes=16 * 1024 * 1024,
        ),
        cost_estimate=pl.CostEstimate(flops=flops, transcendentals=0,
                                      bytes_accessed=bytes_accessed),
    )(A, h0, C_stk, W1_stk, b1_stk, W2_stk, b2_stk, P)


# ---------------------------------------------------------------------------
# One-time parameter prep (hoisted out of the per-call forward)
# ---------------------------------------------------------------------------
def prepare_layer_weights(params, num_layer, emb_dim, E_pad):
    """Fold eval-mode BatchNorm into W2/b2, zero-pad to lane-dense tiles,
    stack along the layer axis, and cast the weight matrices to bf16."""
    W1_list, b1_list, W2_list, b2_list = [], [], [], []
    for l in range(num_layer):
        scale = params[f"bn_gamma_{l}"] * jax.lax.rsqrt(params[f"bn_var_{l}"] + 1e-5)
        W2f = params[f"W2_{l}"] * scale                                      # (2emb, emb)
        b2f = (params[f"b2_{l}"] - params[f"bn_mean_{l}"]) * scale + params[f"bn_beta_{l}"]

        W1p = jnp.zeros((E_pad, 2 * E_pad), jnp.float32
                        ).at[:emb_dim, :2 * emb_dim].set(params[f"W1_{l}"])
        b1p = jnp.zeros((1, 2 * E_pad), jnp.float32
                        ).at[:, :2 * emb_dim].set(params[f"b1_{l}"])
        W2p = jnp.zeros((2 * E_pad, E_pad), jnp.float32
                        ).at[:2 * emb_dim, :emb_dim].set(W2f)
        b2p = jnp.zeros((1, E_pad), jnp.float32).at[:, :emb_dim].set(b2f)
        W1_list.append(W1p.astype(jnp.bfloat16))
        W2_list.append(W2p.astype(jnp.bfloat16))
        b1_list.append(b1p)
        b2_list.append(b2p)
    return (jnp.stack(W1_list),   # (L, E_pad, 2*E_pad) bf16
            jnp.stack(b1_list),   # (L, 1, 2*E_pad)     f32
            jnp.stack(W2_list),   # (L, 2*E_pad, E_pad) bf16 (BN folded)
            jnp.stack(b2_list))   # (L, 1, E_pad)       f32 (BN folded)


# ---------------------------------------------------------------------------
# Full forward (gathers / scatters / per-graph splitting stay in plain JAX)
# ---------------------------------------------------------------------------
def gnn_motifpred_forward(params, layer_weights, x, edge_index, edge_attr,
                          clique_list, batch_list, num_layer, emb_dim,
                          N_pad, S_pad, E_pad):
    W1_stk, b1_stk, W2_stk, b2_stk = layer_weights
    N = x.shape[0]

    # GIN adds self-loops with edge_attr (bond_type=4, bond_dir=0).
    self_idx = jnp.arange(N, dtype=jnp.int32)
    src_all = jnp.concatenate([edge_index[0], self_idx])
    tgt_all = jnp.concatenate([edge_index[1], self_idx])
    self_attr = jnp.stack([jnp.full((N,), 4, jnp.int32),
                           jnp.zeros((N,), jnp.int32)], axis=1)
    edge_attr_all = jnp.concatenate([edge_attr, self_attr], axis=0)

    # Dense adjacency (target x source), zero-padded, bf16 (small integer
    # multiplicities, exact in bf16).
    A = (jnp.zeros((N_pad, N_pad), jnp.float32)
         .at[tgt_all, src_all].add(1.0)).astype(jnp.bfloat16)

    # Atom embeddings, padded to a lane-dense (N_pad, E_pad) slab.
    h0 = params["x_emb1"][x[:, 0]] + params["x_emb2"][x[:, 1]]
    h0 = jnp.zeros((N_pad, E_pad), jnp.float32).at[:N, :emb_dim].set(h0)

    # Per-layer edge-embedding scatters C_l (independent of h -> precompute).
    C_list = []
    for l in range(num_layer):
        eemb = (params[f"edge_emb1_{l}"][edge_attr_all[:, 0]]
                + params[f"edge_emb2_{l}"][edge_attr_all[:, 1]])
        C = jnp.zeros((N_pad, emb_dim), jnp.float32).at[tgt_all].add(eemb)
        C_list.append(jnp.pad(C, ((0, 0), (0, E_pad - emb_dim))))
    C_stk = jnp.stack(C_list)    # (L, N_pad, E_pad) f32

    # group_node_rep + per-graph pool(graph, clique) == one segment-mean over
    # global segment ids (graph offset + clique id), then split per graph.
    batch_size = max(batch_list) + 1
    n_cliques = [max(c for c, b in zip(clique_list, batch_list) if b == g) + 1
                 for g in range(batch_size)]
    offsets = [sum(n_cliques[:g]) for g in range(batch_size)]
    seg = [c + offsets[b] for c, b in zip(clique_list, batch_list)]
    seg_arr = jnp.array(seg, dtype=jnp.int32)

    P = jnp.zeros((S_pad, N_pad), jnp.float32).at[seg_arr, jnp.arange(N)].set(1.0)
    counts = jnp.zeros((S_pad, 1), jnp.float32).at[seg_arr, 0].add(1.0)
    inv_counts = 1.0 / jnp.maximum(counts, 1.0)   # empty padded segments -> mean 0
    P = P * inv_counts                            # fold 1/counts into P -> pure matmul

    pooled = fused_gin_pool(A, h0, C_stk, W1_stk, b1_stk, W2_stk, b2_stk, P,
                            S_pad, E_pad)
    pooled = pooled[:, :emb_dim]                  # strip feature padding

    motif_reps = [pooled[offsets[g]:offsets[g] + n_cliques[g]]
                  for g in range(batch_size)]
    return motif_reps


# ---------------------------------------------------------------------------
# Pure-JAX f32 reference (mirrors the PyTorch forward) for a sanity check
# ---------------------------------------------------------------------------
def reference_forward(params, x, edge_index, edge_attr, clique_list, batch_list,
                      num_layer, emb_dim):
    N = x.shape[0]
    self_idx = jnp.arange(N, dtype=jnp.int32)
    src_all = jnp.concatenate([edge_index[0], self_idx])
    tgt_all = jnp.concatenate([edge_index[1], self_idx])
    self_attr = jnp.stack([jnp.full((N,), 4, jnp.int32),
                           jnp.zeros((N,), jnp.int32)], axis=1)
    edge_attr_all = jnp.concatenate([edge_attr, self_attr], axis=0)

    h = params["x_emb1"][x[:, 0]] + params["x_emb2"][x[:, 1]]
    for l in range(num_layer):
        eemb = (params[f"edge_emb1_{l}"][edge_attr_all[:, 0]]
                + params[f"edge_emb2_{l}"][edge_attr_all[:, 1]])
        msg = h[src_all] + eemb
        agg = jnp.zeros((N, emb_dim), jnp.float32).at[tgt_all].add(msg)
        z = agg @ params[f"W1_{l}"] + params[f"b1_{l}"]
        z = jnp.maximum(z, 0.0)
        z = z @ params[f"W2_{l}"] + params[f"b2_{l}"]
        z = ((z - params[f"bn_mean_{l}"]) * jax.lax.rsqrt(params[f"bn_var_{l}"] + 1e-5)
             * params[f"bn_gamma_{l}"] + params[f"bn_beta_{l}"])
        if l < num_layer - 1:
            z = jnp.maximum(z, 0.0)
        h = z

    batch_size = max(batch_list) + 1
    motif_reps, count = [], 0
    for g in range(batch_size):
        n_g = sum(1 for b in batch_list if b == g)
        hg = h[count:count + n_g]
        cg = jnp.array([c for c, b in zip(clique_list, batch_list) if b == g],
                       dtype=jnp.int32)
        n_cl = max(c for c, b in zip(clique_list, batch_list) if b == g) + 1
        sums = jnp.zeros((n_cl, emb_dim), jnp.float32).at[cg].add(hg)
        cnts = jnp.zeros((n_cl, 1), jnp.float32).at[cg, 0].add(1.0)
        motif_reps.append(sums / jnp.maximum(cnts, 1.0))
        count += n_g
    return motif_reps


# ---------------------------------------------------------------------------
# Deterministic parameter init + example data
# ---------------------------------------------------------------------------
def init_params(key, num_layer, emb_dim, num_tasks):
    num_atom_type, num_chirality = 120, 3
    num_bond_type, num_bond_dir = 6, 3

    def nrm(k, shape, scale=0.1):
        return scale * jax.random.normal(k, shape, jnp.float32)

    keys = iter(jax.random.split(key, 8 + 8 * num_layer))
    p = {
        "x_emb1": nrm(next(keys), (num_atom_type, emb_dim)),
        "x_emb2": nrm(next(keys), (num_chirality, emb_dim)),
        # graph_pred_linear exists in __init__ but is unused in forward.
        "pred_W": nrm(next(keys), (emb_dim, num_tasks)),
        "pred_b": jnp.zeros((num_tasks,), jnp.float32),
    }
    for l in range(num_layer):
        p[f"edge_emb1_{l}"] = nrm(next(keys), (num_bond_type, emb_dim))
        p[f"edge_emb2_{l}"] = nrm(next(keys), (num_bond_dir, emb_dim))
        p[f"W1_{l}"] = nrm(next(keys), (emb_dim, 2 * emb_dim))
        p[f"b1_{l}"] = jnp.zeros((1, 2 * emb_dim), jnp.float32)
        p[f"W2_{l}"] = nrm(next(keys), (2 * emb_dim, emb_dim))
        p[f"b2_{l}"] = jnp.zeros((1, emb_dim), jnp.float32)
        p[f"bn_gamma_{l}"] = jnp.ones((1, emb_dim), jnp.float32)
        p[f"bn_beta_{l}"] = jnp.zeros((1, emb_dim), jnp.float32)
        p[f"bn_mean_{l}"] = jnp.zeros((1, emb_dim), jnp.float32)
        p[f"bn_var_{l}"] = jnp.ones((1, emb_dim), jnp.float32)
    return p


if __name__ == "__main__":
    key = jax.random.PRNGKey(0)

    num_layer = 2          # module requires >= 2
    emb_dim = 32
    num_tasks = 1
    JK = "last"
    graph_pooling = "mean"  # global_mean_pool

    # Two small molecular graphs (chains), 5 + 6 nodes.
    nodes_per_graph = [5, 6]
    N = sum(nodes_per_graph)
    batch_list = [0] * 5 + [1] * 6
    clique_list = [0, 0, 1, 1, 1, 0, 1, 1, 2, 2, 2]  # motif id per node

    src, tgt, off = [], [], 0
    for n in nodes_per_graph:
        for i in range(n - 1):
            src += [off + i, off + i + 1]
            tgt += [off + i + 1, off + i]
        off += n
    edge_index = jnp.array([src, tgt], dtype=jnp.int32)   # (2, 18)
    E = edge_index.shape[1]

    key, k1, k2, k3, kp = jax.random.split(key, 5)
    x = jnp.stack([jax.random.randint(k1, (N,), 0, 120),
                   jax.random.randint(k2, (N,), 0, 3)], axis=1).astype(jnp.int32)
    edge_attr = jnp.stack([jax.random.randint(k3, (E,), 0, 4),
                           jnp.zeros((E,), jnp.int32)], axis=1).astype(jnp.int32)

    params = init_params(kp, num_layer, emb_dim, num_tasks)

    # Padding: N_pad lane-dense for A; E_pad = next multiple of 128 of emb_dim
    # (emb_dim=32 toy -> 128; production emb_dim=300 -> 384).
    N_pad = 128
    E_pad = 128 * ((emb_dim + 127) // 128)
    S_pad = 8     # padded total motif/segment count (sublane-aligned)

    # One-time weight prep (BN fold + pad + stack + bf16 cast), reused per call.
    layer_weights = prepare_layer_weights(params, num_layer, emb_dim, E_pad)

    motif_reps = gnn_motifpred_forward(params, layer_weights, x, edge_index,
                                       edge_attr, clique_list, batch_list,
                                       num_layer, emb_dim, N_pad, S_pad, E_pad)
    for r in motif_reps:
        jax.block_until_ready(r)

    assert motif_reps[0].shape == (2, emb_dim)
    assert motif_reps[1].shape == (3, emb_dim)
    assert all(bool(jnp.all(jnp.isfinite(r))) for r in motif_reps)

    # Loose-tolerance check vs. f32 reference (kernel uses bf16 MXU operands).
    ref_reps = reference_forward(params, x, edge_index, edge_attr,
                                 clique_list, batch_list, num_layer, emb_dim)
    for r, rr in zip(motif_reps, ref_reps):
        assert float(jnp.max(jnp.abs(r - rr))) < 0.1

    print("KERNEL_OK")
</pallas_src>

<mosaic_0001>
module attributes {stable_mosaic.version = 11 : i64} {
  func.func @fused_gin_pool_kernel(%arg0: memref<128x128xbf16, #tpu.memory_space<vmem>>, %arg1: memref<128x128xf32, #tpu.memory_space<vmem>>, %arg2: memref<2x128x128xf32, #tpu.memory_space<vmem>>, %arg3: memref<2x128x256xbf16, #tpu.memory_space<vmem>>, %arg4: memref<2x1x256xf32, #tpu.memory_space<vmem>>, %arg5: memref<2x256x128xbf16, #tpu.memory_space<vmem>>, %arg6: memref<2x1x128xf32, #tpu.memory_space<vmem>>, %arg7: memref<8x128xf32, #tpu.memory_space<vmem>>, %arg8: memref<8x128xf32, #tpu.memory_space<vmem>>) attributes {dimension_semantics = [], scalar_prefetch = 0 : i64, scratch_operands = 0 : i64, tpu.core_type = #tpu.core_type<tc>} {
    %c0 = arith.constant 0 : index
    %c0_0 = arith.constant 0 : index
    %0 = vector.load %arg0[%c0, %c0_0] : memref<128x128xbf16, #tpu.memory_space<vmem>>, vector<128x128xbf16>
    %c0_1 = arith.constant 0 : index
    %c0_2 = arith.constant 0 : index
    %1 = vector.load %arg1[%c0_1, %c0_2] : memref<128x128xf32, #tpu.memory_space<vmem>>, vector<128x128xf32>
    %2 = arith.truncf %1 : vector<128x128xf32> to vector<128x128xbf16>
    %cst = arith.constant dense<0.000000e+00> : vector<128x128xf32>
    %3 = tpu.matmul %0, %2, %cst {dimension_numbers = #tpu.dot_dimension_numbers<[1], [0], [0], [1], [0, 0, 1, 1], [], []>} : vector<128x128xbf16>, vector<128x128xbf16>, vector<128x128xf32> -> vector<128x128xf32>
    %c0_3 = arith.constant 0 : index
    %c0_4 = arith.constant 0 : index
    %c0_5 = arith.constant 0 : index
    %4 = vector.load %arg2[%c0_3, %c0_4, %c0_5] : memref<2x128x128xf32, #tpu.memory_space<vmem>>, vector<1x128x128xf32>
    %5 = vector.shape_cast %4 : vector<1x128x128xf32> to vector<128x128xf32>
    %6 = arith.addf %3, %5 : vector<128x128xf32>
    %7 = arith.truncf %6 : vector<128x128xf32> to vector<128x128xbf16>
    %c0_6 = arith.constant 0 : index
    %c0_7 = arith.constant 0 : index
    %c0_8 = arith.constant 0 : index
    %8 = vector.load %arg3[%c0_6, %c0_7, %c0_8] : memref<2x128x256xbf16, #tpu.memory_space<vmem>>, vector<1x128x256xbf16>
    %9 = vector.shape_cast %8 : vector<1x128x256xbf16> to vector<128x256xbf16>
    %cst_9 = arith.constant dense<0.000000e+00> : vector<128x256xf32>
    %10 = tpu.matmul %7, %9, %cst_9 {dimension_numbers = #tpu.dot_dimension_numbers<[1], [0], [0], [1], [0, 0, 1, 1], [], []>} : vector<128x128xbf16>, vector<128x256xbf16>, vector<128x256xf32> -> vector<128x256xf32>
    %c0_10 = arith.constant 0 : index
    %c0_11 = arith.constant 0 : index
    %c0_12 = arith.constant 0 : index
    %11 = vector.load %arg4[%c0_10, %c0_11, %c0_12] : memref<2x1x256xf32, #tpu.memory_space<vmem>>, vector<1x1x256xf32>
    %12 = vector.shape_cast %11 : vector<1x1x256xf32> to vector<1x256xf32>
    %13 = vector.broadcast %12 : vector<1x256xf32> to vector<128x256xf32>
    %14 = arith.addf %10, %13 : vector<128x256xf32>
    %cst_13 = arith.constant 0.000000e+00 : f32
    %15 = vector.broadcast %cst_13 : f32 to vector<128x256xf32>
    %16 = arith.maximumf %14, %15 : vector<128x256xf32>
    %17 = arith.truncf %16 : vector<128x256xf32> to vector<128x256xbf16>
    %c0_14 = arith.constant 0 : index
    %c0_15 = arith.constant 0 : index
    %c0_16 = arith.constant 0 : index
    %18 = vector.load %arg5[%c0_14, %c0_15, %c0_16] : memref<2x256x128xbf16, #tpu.memory_space<vmem>>, vector<1x256x128xbf16>
    %19 = vector.shape_cast %18 : vector<1x256x128xbf16> to vector<256x128xbf16>
    %cst_17 = arith.constant dense<0.000000e+00> : vector<128x128xf32>
    %20 = tpu.matmul %17, %19, %cst_17 {dimension_numbers = #tpu.dot_dimension_numbers<[1], [0], [0], [1], [0, 0, 1, 1], [], []>} : vector<128x256xbf16>, vector<256x128xbf16>, vector<128x128xf32> -> vector<128x128xf32>
    %c0_18 = arith.constant 0 : index
    %c0_19 = arith.constant 0 : index
    %c0_20 = arith.constant 0 : index
    %21 = vector.load %arg6[%c0_18, %c0_19, %c0_20] : memref<2x1x128xf32, #tpu.memory_space<vmem>>, vector<1x1x128xf32>
    %22 = vector.shape_cast %21 : vector<1x1x128xf32> to vector<1x128xf32>
    %23 = vector.broadcast %22 : vector<1x128xf32> to vector<128x128xf32>
    %24 = arith.addf %20, %23 : vector<128x128xf32>
    %cst_21 = arith.constant 0.000000e+00 : f32
    %25 = vector.broadcast %cst_21 : f32 to vector<128x128xf32>
    %26 = arith.maximumf %24, %25 : vector<128x128xf32>
    %27 = arith.truncf %26 : vector<128x128xf32> to vector<128x128xbf16>
    %cst_22 = arith.constant dense<0.000000e+00> : vector<128x128xf32>
    %28 = tpu.matmul %0, %27, %cst_22 {dimension_numbers = #tpu.dot_dimension_numbers<[1], [0], [0], [1], [0, 0, 1, 1], [], []>} : vector<128x128xbf16>, vector<128x128xbf16>, vector<128x128xf32> -> vector<128x128xf32>
    %c1 = arith.constant 1 : index
    %c0_23 = arith.constant 0 : index
    %c0_24 = arith.constant 0 : index
    %29 = vector.load %arg2[%c1, %c0_23, %c0_24] : memref<2x128x128xf32, #tpu.memory_space<vmem>>, vector<1x128x128xf32>
    %30 = vector.shape_cast %29 : vector<1x128x128xf32> to vector<128x128xf32>
    %31 = arith.addf %28, %30 : vector<128x128xf32>
    %32 = arith.truncf %31 : vector<128x128xf32> to vector<128x128xbf16>
    %c1_25 = arith.constant 1 : index
    %c0_26 = arith.constant 0 : index
    %c0_27 = arith.constant 0 : index
    %33 = vector.load %arg3[%c1_25, %c0_26, %c0_27] : memref<2x128x256xbf16, #tpu.memory_space<vmem>>, vector<1x128x256xbf16>
    %34 = vector.shape_cast %33 : vector<1x128x256xbf16> to vector<128x256xbf16>
    %cst_28 = arith.constant dense<0.000000e+00> : vector<128x256xf32>
    %35 = tpu.matmul %32, %34, %cst_28 {dimension_numbers = #tpu.dot_dimension_numbers<[1], [0], [0], [1], [0, 0, 1, 1], [], []>} : vector<128x128xbf16>, vector<128x256xbf16>, vector<128x256xf32> -> vector<128x256xf32>
    %c1_29 = arith.constant 1 : index
    %c0_30 = arith.constant 0 : index
    %c0_31 = arith.constant 0 : index
    %36 = vector.load %arg4[%c1_29, %c0_30, %c0_31] : memref<2x1x256xf32, #tpu.memory_space<vmem>>, vector<1x1x256xf32>
    %37 = vector.shape_cast %36 : vector<1x1x256xf32> to vector<1x256xf32>
    %38 = vector.broadcast %37 : vector<1x256xf32> to vector<128x256xf32>
    %39 = arith.addf %35, %38 : vector<128x256xf32>
    %cst_32 = arith.constant 0.000000e+00 : f32
    %40 = vector.broadcast %cst_32 : f32 to vector<128x256xf32>
    %41 = arith.maximumf %39, %40 : vector<128x256xf32>
    %42 = arith.truncf %41 : vector<128x256xf32> to vector<128x256xbf16>
    %c1_33 = arith.constant 1 : index
    %c0_34 = arith.constant 0 : index
    %c0_35 = arith.constant 0 : index
    %43 = vector.load %arg5[%c1_33, %c0_34, %c0_35] : memref<2x256x128xbf16, #tpu.memory_space<vmem>>, vector<1x256x128xbf16>
    %44 = vector.shape_cast %43 : vector<1x256x128xbf16> to vector<256x128xbf16>
    %cst_36 = arith.constant dense<0.000000e+00> : vector<128x128xf32>
    %45 = tpu.matmul %42, %44, %cst_36 {dimension_numbers = #tpu.dot_dimension_numbers<[1], [0], [0], [1], [0, 0, 1, 1], [], []>} : vector<128x256xbf16>, vector<256x128xbf16>, vector<128x128xf32> -> vector<128x128xf32>
    %c1_37 = arith.constant 1 : index
    %c0_38 = arith.constant 0 : index
    %c0_39 = arith.constant 0 : index
    %46 = vector.load %arg6[%c1_37, %c0_38, %c0_39] : memref<2x1x128xf32, #tpu.memory_space<vmem>>, vector<1x1x128xf32>
    %47 = vector.shape_cast %46 : vector<1x1x128xf32> to vector<1x128xf32>
    %48 = vector.broadcast %47 : vector<1x128xf32> to vector<128x128xf32>
    %49 = arith.addf %45, %48 : vector<128x128xf32>
    %c0_40 = arith.constant 0 : index
    %c0_41 = arith.constant 0 : index
    %50 = vector.load %arg7[%c0_40, %c0_41] : memref<8x128xf32, #tpu.memory_space<vmem>>, vector<8x128xf32>
    %cst_42 = arith.constant dense<0.000000e+00> : vector<8x128xf32>
    %51 = tpu.matmul %50, %49, %cst_42 {dimension_numbers = #tpu.dot_dimension_numbers<[1], [0], [0], [1], [0, 0, 1, 1], [], []>} : vector<8x128xf32>, vector<128x128xf32>, vector<8x128xf32> -> vector<8x128xf32>
    %c0_43 = arith.constant 0 : index
    %c0_44 = arith.constant 0 : index
    %52 = vector.load %arg8[%c0_43, %c0_44] : memref<8x128xf32, #tpu.memory_space<vmem>>, vector<8x128xf32>
    tpu.vector_store %arg8[%c0_43, %c0_44], %51 {strides = array<i32>} : memref<8x128xf32, #tpu.memory_space<vmem>>, vector<8x128xf32>,
    return
  }
}

</mosaic_0001>

<llo_original>
// kernel: tpu_custom_call.1
$region0: #{tpu_custom_call.1}
  #allocation0 [shape = 'u32[]', space=smem, size = 0x4, offset = 0x4, fixed_abs, tag = 'smem constant byte address 0x4 - core index']
  #allocation1 [shape = 'u32[72,128]{1,0:T(1,128)}', space=vmem, size = 0x9000, scoped, tag = 'internal scratch']
  %s0 = inlined_call_operand.hbm [shape: bf16[128,128], index: 0, kind: input, shape index: {}]
  %s1 = inlined_call_operand.hbm [shape: f32[128,128], index: 1, kind: input, shape index: {}]
  %s2 = inlined_call_operand.hbm [shape: f32[2,128,128], index: 2, kind: input, shape index: {}]
  %s3 = inlined_call_operand.hbm [shape: bf16[2,128,256], index: 3, kind: input, shape index: {}]
  %s4 = inlined_call_operand.hbm [shape: f32[2,1,256], index: 4, kind: input, shape index: {}]
  %s5 = inlined_call_operand.hbm [shape: bf16[2,256,128], index: 5, kind: input, shape index: {}]
  %s6 = inlined_call_operand.vmem [shape: f32[2,1,128], index: 6, kind: input, shape index: {}]
  %s7 = inlined_call_operand.hbm [shape: f32[8,128], index: 7, kind: input, shape index: {}]
  %s8 = inlined_call_operand.hbm [shape: f32[8,128], index: 8, kind: output, shape index: {}]
  %s9 = sld [smem:[#allocation0]]
  $region70: #{tpu_custom_call.1} parent=0
    _
  %s11 = ssub.s32 1, %s9
  %s12 = scalar_select 0, %s11, %s9
  $region1: #{tpu_custom_call.1} parent=0
    #allocation2 [shape = 'u8[32768]{0}', space=vmem, size = 0x8000, scoped, tag = 'input window, operand 0, single buffered']
    #allocation3 [shape = 's32[1]{0}', space=sflag, size = 0x4, scoped, tag = 'scoped memory for tpu_custom_call.1']
    #allocation4 [shape = 's32[1]{0}', space=sflag, size = 0x4, scoped, tag = 'scoped memory for tpu_custom_call.1']
    #allocation5 [shape = 'u8[65536]{0}', space=vmem, size = 0x10000, scoped, tag = 'input window, operand 1, single buffered']
    #allocation6 [shape = 's32[1]{0}', space=sflag, size = 0x4, scoped, tag = 'scoped memory for tpu_custom_call.1']
    #allocation7 [shape = 'u8[131072]{0}', space=vmem, size = 0x20000, scoped, tag = 'input window, operand 2, single buffered']
    #allocation8 [shape = 'u8[131072]{0}', space=vmem, size = 0x20000, scoped, tag = 'input window, operand 3, single buffered']
    #allocation9 [shape = 's32[1]{0}', space=sflag, size = 0x4, scoped, tag = 'scoped memory for tpu_custom_call.1']
    #allocation10 [shape = 'u8[2048]{0}', space=vmem, size = 0x800, scoped, tag = 'input window, operand 4, single buffered']
    #allocation11 [shape = 'u8[131072]{0}', space=vmem, size = 0x20000, scoped, tag = 'input window, operand 5, single buffered']
    #allocation12 [shape = 's32[1]{0}', space=sflag, size = 0x4, scoped, tag = 'scoped memory for tpu_custom_call.1']
    #allocation13 [shape = 'u8[4096]{0}', space=vmem, size = 0x1000, scoped, tag = 'input window, operand 7, single buffered']
    #allocation14 [shape = 'u8[4096]{0}', space=vmem, size = 0x1000, scoped, tag = 'output window, operand 0, single buffered']
    %13 = vsyncpa [#allocation3], 0
    %14 = vsyncpa [#allocation6], 0
    %15 = vsyncpa [#allocation9], 0
    %16 = vsyncpa [#allocation12], 0
    %17 = vsyncpa [#allocation4], 0
    // Predicated region
    $region2: #{tpu_custom_call.1} parent=1 // pred_check
      _
    $region3: #{tpu_custom_call.1} parent=1 // pred_check_branch
      %19 = sbr.rel (0) target = $region5
    $region4: #{tpu_custom_call.1} parent=1 // pred_region
      %21 = vsyncadd [#allocation3], 0
      %s22 = sshll.u32 %s0, 4
      %s23 = int_to_ptr.hbm [resolvable:$true] %s22
      %s24 = sshll.u32 [#allocation2], 4
      %s25 = int_to_ptr.vmem [resolvable:$true] %s24
      %30 = dma.hbm_to_vmem [thread:$0]  %s23, 1024, %s25, [#allocation3], 64, 64, 4
    $region5: #{tpu_custom_call.1} parent=1 // pred_fallthru
      _
    // Predicated region
    $region6: #{tpu_custom_call.1} parent=1 // pred_check
      _
    $region7: #{tpu_custom_call.1} parent=1 // pred_check_branch
      %32 = sbr.rel (0) target = $region9
    $region8: #{tpu_custom_call.1} parent=1 // pred_region
      %34 = vsyncadd [#allocation6], 0
      %s35 = sshll.u32 %s1, 4
      %s36 = int_to_ptr.hbm [resolvable:$true] %s35
      %s37 = sshll.u32 [#allocation5], 4
      %s38 = int_to_ptr.vmem [resolvable:$true] %s37
      %43 = dma.hbm_to_vmem [thread:$0]  %s36, 2048, %s38, [#allocation6], 128, 128, 8
    $region9: #{tpu_custom_call.1} parent=1 // pred_fallthru
      _
    // Predicated region
    $region10: #{tpu_custom_call.1} parent=1 // pred_check
      _
    $region11: #{tpu_custom_call.1} parent=1 // pred_check_branch
      %45 = sbr.rel (0) target = $region13
    $region12: #{tpu_custom_call.1} parent=1 // pred_region
      %47 = vsyncadd [#allocation6], 0
      %s48 = sshll.u32 %s2, 4
      %s49 = int_to_ptr.hbm [resolvable:$true] %s48
      %s50 = sshll.u32 [#allocation7], 4
      %s51 = int_to_ptr.vmem [resolvable:$true] %s50
      %56 = dma.hbm_to_vmem [thread:$0]  %s49, 4096, %s51, [#allocation6], 128, 128, 8
    $region13: #{tpu_custom_call.1} parent=1 // pred_fallthru
      _
    // Predicated region
    $region14: #{tpu_custom_call.1} parent=1 // pred_check
      _
    $region15: #{tpu_custom_call.1} parent=1 // pred_check_branch
      %58 = sbr.rel (0) target = $region17
    $region16: #{tpu_custom_call.1} parent=1 // pred_region
      %60 = vsyncadd [#allocation9], 0
      %s61 = sshll.u32 %s3, 4
      %s62 = int_to_ptr.hbm [resolvable:$true] %s61
      %s63 = sshll.u32 [#allocation8], 4
      %s64 = int_to_ptr.vmem [resolvable:$true] %s63
      %69 = dma.hbm_to_vmem [thread:$0]  %s62, 4096, %s64, [#allocation9], 128, 128, 8
    $region17: #{tpu_custom_call.1} parent=1 // pred_fallthru
      _
    // Predicated region
    $region18: #{tpu_custom_call.1} parent=1 // pred_check
      _
    $region19: #{tpu_custom_call.1} parent=1 // pred_check_branch
      %71 = sbr.rel (0) target = $region21
    $region20: #{tpu_custom_call.1} parent=1 // pred_region
      %73 = vsyncadd [#allocation9], 0
      %s74 = sshll.u32 %s4, 4
      %s75 = int_to_ptr.hbm [resolvable:$true] %s74
      %s76 = sshll.u32 [#allocation10], 4
      %s77 = int_to_ptr.vmem [resolvable:$true] %s76
      %82 = dma.hbm_to_vmem [thread:$0]  %s75, 64, %s77, [#allocation9], 32, 32, 2
    $region21: #{tpu_custom_call.1} parent=1 // pred_fallthru
      _
    // Predicated region
    $region22: #{tpu_custom_call.1} parent=1 // pred_check
      _
    $region23: #{tpu_custom_call.1} parent=1 // pred_check_branch
      %84 = sbr.rel (0) target = $region25
    $region24: #{tpu_custom_call.1} parent=1 // pred_region
      %86 = vsyncadd [#allocation12], 0
      %s87 = sshll.u32 %s5, 4
      %s88 = int_to_ptr.hbm [resolvable:$true] %s87
      %s89 = sshll.u32 [#allocation11], 4
      %s90 = int_to_ptr.vmem [resolvable:$true] %s89
      %95 = dma.hbm_to_vmem [thread:$0]  %s88, 4096, %s90, [#allocation12], 64, 64, 4
    $region25: #{tpu_custom_call.1} parent=1 // pred_fallthru
      _
    // Predicated region
    $region26: #{tpu_custom_call.1} parent=1 // pred_check
      _
    $region27: #{tpu_custom_call.1} parent=1 // pred_check_branch
      %97 = sbr.rel (0) target = $region29
    $region28: #{tpu_custom_call.1} parent=1 // pred_region
      _
    $region29: #{tpu_custom_call.1} parent=1 // pred_fallthru
      _
    // Predicated region
    $region30: #{tpu_custom_call.1} parent=1 // pred_check
      _
    $region31: #{tpu_custom_call.1} parent=1 // pred_check_branch
      %99 = sbr.rel (0) target = $region33
    $region32: #{tpu_custom_call.1} parent=1 // pred_region
      %101 = vsyncadd [#allocation12], 0
      %s103 = sshll.u32 %s7, 4
      %s104 = int_to_ptr.hbm [resolvable:$true] %s103
      %s105 = sshll.u32 [#allocation13], 4
      %s106 = int_to_ptr.vmem [resolvable:$true] %s105
      %108 = dma.hbm_to_vmem [thread:$0]  %s104, 128, %s106, [#allocation12]
    $region33: #{tpu_custom_call.1} parent=1 // pred_fallthru
      _
    // Predicated region
    $region34: #{tpu_custom_call.1} parent=1 // pred_check
      _
    $region35: #{tpu_custom_call.1} parent=1 // pred_check_branch
      %110 = sbr.rel (0) target = $region37
    $region36: #{tpu_custom_call.1} parent=1 // pred_region
      %112 = dma.done [#allocation3], 1024
    $region37: #{tpu_custom_call.1} parent=1 // pred_fallthru
      _
    // Predicated region
    $region38: #{tpu_custom_call.1} parent=1 // pred_check
      _
    $region39: #{tpu_custom_call.1} parent=1 // pred_check_branch
      %114 = sbr.rel (0) target = $region41
    $region40: #{tpu_custom_call.1} parent=1 // pred_region
      %116 = dma.done [#allocation6], 2048
    $region41: #{tpu_custom_call.1} parent=1 // pred_fallthru
      _
    // Predicated region
    $region42: #{tpu_custom_call.1} parent=1 // pred_check
      _
    $region43: #{tpu_custom_call.1} parent=1 // pred_check_branch
      %118 = sbr.rel (0) target = $region45
    $region44: #{tpu_custom_call.1} parent=1 // pred_region
      %120 = dma.done [#allocation6], 4096
    $region45: #{tpu_custom_call.1} parent=1 // pred_fallthru
      _
    // Predicated region
    $region46: #{tpu_custom_call.1} parent=1 // pred_check
      _
    $region47: #{tpu_custom_call.1} parent=1 // pred_check_branch
      %122 = sbr.rel (0) target = $region49
    $region48: #{tpu_custom_call.1} parent=1 // pred_region
      %124 = dma.done [#allocation9], 4096
    $region49: #{tpu_custom_call.1} parent=1 // pred_fallthru
      _
    // Predicated region
    $region50: #{tpu_custom_call.1} parent=1 // pred_check
      _
    $region51: #{tpu_custom_call.1} parent=1 // pred_check_branch
      %126 = sbr.rel (0) target = $region53
    $region52: #{tpu_custom_call.1} parent=1 // pred_region
      %128 = dma.done [#allocation9], 64
    $region53: #{tpu_custom_call.1} parent=1 // pred_fallthru
      _
    // Predicated region
    $region54: #{tpu_custom_call.1} parent=1 // pred_check
      _
    $region55: #{tpu_custom_call.1} parent=1 // pred_check_branch
      %130 = sbr.rel (0) target = $region57
    $region56: #{tpu_custom_call.1} parent=1 // pred_region
      %132 = dma.done [#allocation12], 4096
    $region57: #{tpu_custom_call.1} parent=1 // pred_fallthru
      _
    // Predicated region
    $region58: #{tpu_custom_call.1} parent=1 // pred_check
      _
    $region59: #{tpu_custom_call.1} parent=1 // pred_check_branch
      %134 = sbr.rel (0) target = $region61
    $region60: #{tpu_custom_call.1} parent=1 // pred_region
      %136 = dma.done [#allocation12], 128
    $region61: #{tpu_custom_call.1} parent=1 // pred_fallthru
      _
    %v137 = vld [vmem:[#allocation2] sm:$0xf]
    %v138 = vld [vmem:[#allocation2 + $0x4] sm:$0xf]
    %v139 = vld [vmem:[#allocation2 + $0x8] sm:$0xf]
    %v140 = vld [vmem:[#allocation2 + $0xc] sm:$0xf]
    %v141 = vld [vmem:[#allocation2 + $0x10] sm:$0xf]
    %v142 = vld [vmem:[#allocation2 + $0x14] sm:$0xf]
    %v143 = vld [vmem:[#allocation2 + $0x18] sm:$0xf]
    %v144 = vld [vmem:[#allocation2 + $0x1c] sm:$0xf]
    %v145 = vld [vmem:[#allocation2 + $0x20] sm:$0xf]
    %v146 = vld [vmem:[#allocation2 + $0x24] sm:$0xf]
    %v147 = vld [vmem:[#allocation2 + $0x28] sm:$0xf]
    %v148 = vld [vmem:[#allocation2 + $0x2c] sm:$0xf]
    %v149 = vld [vmem:[#allocation2 + $0x30] sm:$0xf]
    %v150 = vld [vmem:[#allocation2 + $0x34] sm:$0xf]
    %v151 = vld [vmem:[#allocation2 + $0x38] sm:$0xf]
    %v152 = vld [vmem:[#allocation2 + $0x3c] sm:$0xf]
    %v153 = vld [vmem:[#allocation5] sm:$0xff]
    %v154 = vld [vmem:[#allocation5 + $0x8] sm:$0xff]
    %v155 = vld [vmem:[#allocation5 + $0x10] sm:$0xff]
    %v156 = vld [vmem:[#allocation5 + $0x18] sm:$0xff]
    %v157 = vld [vmem:[#allocation5 + $0x20] sm:$0xff]
    %v158 = vld [vmem:[#allocation5 + $0x28] sm:$0xff]
    %v159 = vld [vmem:[#allocation5 + $0x30] sm:$0xff]
    %v160 = vld [vmem:[#allocation5 + $0x38] sm:$0xff]
    %v161 = vld [vmem:[#allocation5 + $0x40] sm:$0xff]
    %v162 = vld [vmem:[#allocation5 + $0x48] sm:$0xff]
    %v163 = vld [vmem:[#allocation5 + $0x50] sm:$0xff]
    %v164 = vld [vmem:[#allocation5 + $0x58] sm:$0xff]
    %v165 = vld [vmem:[#allocation5 + $0x60] sm:$0xff]
    %v166 = vld [vmem:[#allocation5 + $0x68] sm:$0xff]
    %v167 = vld [vmem:[#allocation5 + $0x70] sm:$0xff]
    %v168 = vld [vmem:[#allocation5 + $0x78] sm:$0xff]
    %v169 = vpack.c.bf16 %v154, %v153
    %v170 = vpack.c.bf16 %v156, %v155
    %v171 = vpack.c.bf16 %v158, %v157
    %v172 = vpack.c.bf16 %v160, %v159
    %v173 = vpack.c.bf16 %v162, %v161
    %v174 = vpack.c.bf16 %v164, %v163
    %v175 = vpack.c.bf16 %v166, %v165
    %v176 = vpack.c.bf16 %v168, %v167
    %v177 = vld [vmem:[#allocation7] sm:$0xff]
    %v178 = vld [vmem:[#allocation7 + $0x8] sm:$0xff]
    %v179 = vld [vmem:[#allocation7 + $0x10] sm:$0xff]
    %v180 = vld [vmem:[#allocation7 + $0x18] sm:$0xff]
    %v181 = vld [vmem:[#allocation7 + $0x20] sm:$0xff]
    %v182 = vld [vmem:[#allocation7 + $0x28] sm:$0xff]
    %v183 = vld [vmem:[#allocation7 + $0x30] sm:$0xff]
    %v184 = vld [vmem:[#allocation7 + $0x38] sm:$0xff]
    %v185 = vld [vmem:[#allocation7 + $0x40] sm:$0xff]
    %v186 = vld [vmem:[#allocation7 + $0x48] sm:$0xff]
    %v187 = vld [vmem:[#allocation7 + $0x50] sm:$0xff]
    %v188 = vld [vmem:[#allocation7 + $0x58] sm:$0xff]
    %v189 = vld [vmem:[#allocation7 + $0x60] sm:$0xff]
    %v190 = vld [vmem:[#allocation7 + $0x68] sm:$0xff]
    %v191 = vld [vmem:[#allocation7 + $0x70] sm:$0xff]
    %v192 = vld [vmem:[#allocation7 + $0x78] sm:$0xff]
    %v209 = vunpack.c.l.b16 %v137
    %v210 = vunpack.c.l.b16 %v138
    %v211 = vunpack.c.l.b16 %v139
    %v212 = vunpack.c.l.b16 %v140
    %v213 = vunpack.c.l.b16 %v141
    %v214 = vunpack.c.l.b16 %v142
    %v215 = vunpack.c.l.b16 %v143
    %v216 = vunpack.c.l.b16 %v144
    %v217 = vunpack.c.l.b16 %v145
    %v218 = vunpack.c.l.b16 %v146
    %v219 = vunpack.c.l.b16 %v147
    %v220 = vunpack.c.l.b16 %v148
    %v221 = vunpack.c.l.b16 %v149
    %v222 = vunpack.c.l.b16 %v150
    %v223 = vunpack.c.l.b16 %v151
    %v224 = vunpack.c.l.b16 %v152
    %v225 = vpack.c.b16 %v210, %v209
    %v226 = vpack.c.b16 %v212, %v211
    %v227 = vpack.c.b16 %v214, %v213
    %v228 = vpack.c.b16 %v216, %v215
    %v229 = vpack.c.b16 %v218, %v217
    %v230 = vpack.c.b16 %v220, %v219
    %v231 = vpack.c.b16 %v222, %v221
    %v232 = vpack.c.b16 %v224, %v223
    %241 = vmatpush.bf16.msra.mxu0 %v176
    %242 = vmatpush.bf16.msra.mxu0 %v175
    %243 = vmatpush.bf16.msra.mxu0 %v174
    %244 = vmatpush.bf16.msra.mxu0 %v173
    %245 = vmatpush.bf16.msra.mxu0 %v172
    %246 = vmatpush.bf16.msra.mxu0 %v171
    %247 = vmatpush.bf16.msra.mxu0 %v170
    %248 = vmatpush.bf16.msra.mxu0 %v169
    %249 = vmatmul.bf16.gmra.mxu0 %v225
    %v250 = vpop.f32.mrf.mxu0
    %v251 = vadd.f32 %v177, %v250
    %v252 = vpop.f32.mrf.mxu0
    %v253 = vadd.f32 %v178, %v252
    %254 = vmatmul.bf16.gmra.mxu0 %v226
    %v255 = vpop.f32.mrf.mxu0
    %v256 = vadd.f32 %v179, %v255
    %v257 = vpop.f32.mrf.mxu0
    %v258 = vadd.f32 %v180, %v257
    %259 = vmatmul.bf16.gmra.mxu0 %v227
    %v260 = vpop.f32.mrf.mxu0
    %v261 = vadd.f32 %v181, %v260
    %v262 = vpop.f32.mrf.mxu0
    %v263 = vadd.f32 %v182, %v262
    %264 = vmatmul.bf16.gmra.mxu0 %v228
    %v265 = vpop.f32.mrf.mxu0
    %v266 = vadd.f32 %v183, %v265
    %v267 = vpop.f32.mrf.mxu0
    %v268 = vadd.f32 %v184, %v267
    %269 = vmatmul.bf16.gmra.mxu0 %v229
    %v270 = vpop.f32.mrf.mxu0
    %v271 = vadd.f32 %v185, %v270
    %v272 = vpop.f32.mrf.mxu0
    %v273 = vadd.f32 %v186, %v272
    %274 = vmatmul.bf16.gmra.mxu0 %v230
    %v275 = vpop.f32.mrf.mxu0
    %v276 = vadd.f32 %v187, %v275
    %v277 = vpop.f32.mrf.mxu0
    %v278 = vadd.f32 %v188, %v277
    %279 = vmatmul.bf16.gmra.mxu0 %v231
    %v280 = vpop.f32.mrf.mxu0
    %v281 = vadd.f32 %v189, %v280
    %v282 = vpop.f32.mrf.mxu0
    %v283 = vadd.f32 %v190, %v282
    %284 = vmatmul.bf16.gmra.mxu0 %v232
    %v285 = vpop.f32.mrf.mxu0
    %v286 = vadd.f32 %v191, %v285
    %v287 = vpop.f32.mrf.mxu0
    %v288 = vadd.f32 %v192, %v287
    %289 = vdwg.mxu0
    %v290 = vpack.c.bf16 %v253, %v251
    %v291 = vpack.c.bf16 %v258, %v256
    %v292 = vpack.c.bf16 %v263, %v261
    %v293 = vpack.c.bf16 %v268, %v266
    %v294 = vpack.c.bf16 %v273, %v271
    %v295 = vpack.c.bf16 %v278, %v276
    %v296 = vpack.c.bf16 %v283, %v281
    %v297 = vpack.c.bf16 %v288, %v286
    %v298 = vld [vmem:[#allocation8] sm:$0xff]
    %v299 = vld [vmem:[#allocation8 + $0x8] sm:$0xff]
    %v300 = vld [vmem:[#allocation8 + $0x10] sm:$0xff]
    %v301 = vld [vmem:[#allocation8 + $0x18] sm:$0xff]
    %v302 = vld [vmem:[#allocation8 + $0x20] sm:$0xff]
    %v303 = vld [vmem:[#allocation8 + $0x28] sm:$0xff]
    %v304 = vld [vmem:[#allocation8 + $0x30] sm:$0xff]
    %v305 = vld [vmem:[#allocation8 + $0x38] sm:$0xff]
    %v306 = vld [vmem:[#allocation8 + $0x40] sm:$0xff]
    %v307 = vld [vmem:[#allocation8 + $0x48] sm:$0xff]
    %v308 = vld [vmem:[#allocation8 + $0x50] sm:$0xff]
    %v309 = vld [vmem:[#allocation8 + $0x58] sm:$0xff]
    %v310 = vld [vmem:[#allocation8 + $0x60] sm:$0xff]
    %v311 = vld [vmem:[#allocation8 + $0x68] sm:$0xff]
    %v312 = vld [vmem:[#allocation8 + $0x70] sm:$0xff]
    %v313 = vld [vmem:[#allocation8 + $0x78] sm:$0xff]
    %v314 = vld [vmem:[#allocation10] sm:$0x3]
    %v316 = vperm.slane %v314, 0
    %v317 = vperm.slane %v314, 1
    %v336 = vunpack.c.l.b16 %v298
    %v337 = vunpack.c.h.b16 %v298
    %v338 = vunpack.c.l.b16 %v299
    %v339 = vunpack.c.h.b16 %v299
    %v340 = vunpack.c.l.b16 %v300
    %v341 = vunpack.c.h.b16 %v300
    %v342 = vunpack.c.l.b16 %v301
    %v343 = vunpack.c.h.b16 %v301
    %v344 = vunpack.c.l.b16 %v302
    %v345 = vunpack.c.h.b16 %v302
    %v346 = vunpack.c.l.b16 %v303
    %v347 = vunpack.c.h.b16 %v303
    %v348 = vunpack.c.l.b16 %v304
    %v349 = vunpack.c.h.b16 %v304
    %v350 = vunpack.c.l.b16 %v305
    %v351 = vunpack.c.h.b16 %v305
    %v352 = vunpack.c.l.b16 %v306
    %v353 = vunpack.c.h.b16 %v306
    %v354 = vunpack.c.l.b16 %v307
    %v355 = vunpack.c.h.b16 %v307
    %v356 = vunpack.c.l.b16 %v308
    %v357 = vunpack.c.h.b16 %v308
    %v358 = vunpack.c.l.b16 %v309
    %v359 = vunpack.c.h.b16 %v309
    %v360 = vunpack.c.l.b16 %v310
    %v361 = vunpack.c.h.b16 %v310
    %v362 = vunpack.c.l.b16 %v311
    %v363 = vunpack.c.h.b16 %v311
    %v364 = vunpack.c.l.b16 %v312
    %v365 = vunpack.c.h.b16 %v312
    %v366 = vunpack.c.l.b16 %v313
    %v367 = vunpack.c.h.b16 %v313
    %v368 = vpack.c.b16 %v338, %v336
    %v369 = vpack.c.b16 %v339, %v337
    %v370 = vpack.c.b16 %v342, %v340
    %v371 = vpack.c.b16 %v343, %v341
    %v372 = vpack.c.b16 %v346, %v344
    %v373 = vpack.c.b16 %v347, %v345
    %v374 = vpack.c.b16 %v350, %v348
    %v375 = vpack.c.b16 %v351, %v349
    %v376 = vpack.c.b16 %v354, %v352
    %v377 = vpack.c.b16 %v355, %v353
    %v378 = vpack.c.b16 %v358, %v356
    %v379 = vpack.c.b16 %v359, %v357
    %v380 = vpack.c.b16 %v362, %v360
    %v381 = vpack.c.b16 %v363, %v361
    %v382 = vpack.c.b16 %v366, %v364
    %v383 = vpack.c.b16 %v367, %v365
    %400 = vmatpush.bf16.msra.mxu0 %v382
    %401 = vmatpush.bf16.msra.mxu0 %v380
    %402 = vmatpush.bf16.msra.mxu0 %v378
    %403 = vmatpush.bf16.msra.mxu0 %v376
    %404 = vmatpush.bf16.msra.mxu0 %v374
    %405 = vmatpush.bf16.msra.mxu0 %v372
    %406 = vmatpush.bf16.msra.mxu0 %v370
    %407 = vmatpush.bf16.msra.mxu0 %v368
    %408 = vmatmul.bf16.gmra.mxu0 %v290
    %v409 = vpop.f32.mrf.mxu0
    %v410 = vadd.f32 %v316, %v409
    %v411 = vpop.f32.mrf.mxu0
    %v412 = vadd.f32 %v316, %v411
    %413 = vmatmul.bf16.gmra.mxu0 %v291
    %v414 = vpop.f32.mrf.mxu0
    %v415 = vadd.f32 %v316, %v414
    %v416 = vpop.f32.mrf.mxu0
    %v417 = vadd.f32 %v316, %v416
    %418 = vmatmul.bf16.gmra.mxu0 %v292
    %v419 = vpop.f32.mrf.mxu0
    %v420 = vadd.f32 %v316, %v419
    %v421 = vpop.f32.mrf.mxu0
    %v422 = vadd.f32 %v316, %v421
    %423 = vmatmul.bf16.gmra.mxu0 %v293
    %v424 = vpop.f32.mrf.mxu0
    %v425 = vadd.f32 %v316, %v424
    %v426 = vpop.f32.mrf.mxu0
    %v427 = vadd.f32 %v316, %v426
    %428 = vmatmul.bf16.gmra.mxu0 %v294
    %v429 = vpop.f32.mrf.mxu0
    %v430 = vadd.f32 %v316, %v429
    %v431 = vpop.f32.mrf.mxu0
    %v432 = vadd.f32 %v316, %v431
    %433 = vmatmul.bf16.gmra.mxu0 %v295
    %v434 = vpop.f32.mrf.mxu0
    %v435 = vadd.f32 %v316, %v434
    %v436 = vpop.f32.mrf.mxu0
    %v437 = vadd.f32 %v316, %v436
    %438 = vmatmul.bf16.gmra.mxu0 %v296
    %v439 = vpop.f32.mrf.mxu0
    %v440 = vadd.f32 %v316, %v439
    %v441 = vpop.f32.mrf.mxu0
    %v442 = vadd.f32 %v316, %v441
    %443 = vmatmul.bf16.gmra.mxu0 %v297
    %v444 = vpop.f32.mrf.mxu0
    %v445 = vadd.f32 %v316, %v444
    %v446 = vpop.f32.mrf.mxu0
    %v447 = vadd.f32 %v316, %v446
    %448 = vdwg.mxu0
    %449 = vmatpush.bf16.msra.mxu0 %v383
    %450 = vmatpush.bf16.msra.mxu0 %v381
    %451 = vmatpush.bf16.msra.mxu0 %v379
    %452 = vmatpush.bf16.msra.mxu0 %v377
    %453 = vmatpush.bf16.msra.mxu0 %v375
    %454 = vmatpush.bf16.msra.mxu0 %v373
    %455 = vmatpush.bf16.msra.mxu0 %v371
    %456 = vmatpush.bf16.msra.mxu0 %v369
    %457 = vmatmul.bf16.gmra.mxu0 %v290
    %v458 = vpop.f32.mrf.mxu0
    %v459 = vadd.f32 %v317, %v458
    %v460 = vpop.f32.mrf.mxu0
    %v461 = vadd.f32 %v317, %v460
    %462 = vmatmul.bf16.gmra.mxu0 %v291
    %v463 = vpop.f32.mrf.mxu0
    %v464 = vadd.f32 %v317, %v463
    %v465 = vpop.f32.mrf.mxu0
    %v466 = vadd.f32 %v317, %v465
    %467 = vmatmul.bf16.gmra.mxu0 %v292
    %v468 = vpop.f32.mrf.mxu0
    %v469 = vadd.f32 %v317, %v468
    %v470 = vpop.f32.mrf.mxu0
    %v471 = vadd.f32 %v317, %v470
    %472 = vmatmul.bf16.gmra.mxu0 %v293
    %v473 = vpop.f32.mrf.mxu0
    %v474 = vadd.f32 %v317, %v473
    %v475 = vpop.f32.mrf.mxu0
    %v476 = vadd.f32 %v317, %v475
    %477 = vmatmul.bf16.gmra.mxu0 %v294
    %v478 = vpop.f32.mrf.mxu0
    %v479 = vadd.f32 %v317, %v478
    %v480 = vpop.f32.mrf.mxu0
    %v481 = vadd.f32 %v317, %v480
    %482 = vmatmul.bf16.gmra.mxu0 %v295
    %v483 = vpop.f32.mrf.mxu0
    %v484 = vadd.f32 %v317, %v483
    %v485 = vpop.f32.mrf.mxu0
    %v486 = vadd.f32 %v317, %v485
    %487 = vmatmul.bf16.gmra.mxu0 %v296
    %v488 = vpop.f32.mrf.mxu0
    %v489 = vadd.f32 %v317, %v488
    %v490 = vpop.f32.mrf.mxu0
    %v491 = vadd.f32 %v317, %v490
    %492 = vmatmul.bf16.gmra.mxu0 %v297
    %v493 = vpop.f32.mrf.mxu0
    %v494 = vadd.f32 %v317, %v493
    %v495 = vpop.f32.mrf.mxu0
    %v496 = vadd.f32 %v317, %v495
    %497 = vdwg.mxu0
    %v498 = vmax.f32 %v410, 0.0
    %v499 = vmax.f32 %v459, 0.0
    %v500 = vmax.f32 %v412, 0.0
    %v501 = vmax.f32 %v461, 0.0
    %v502 = vmax.f32 %v415, 0.0
    %v503 = vmax.f32 %v464, 0.0
    %v504 = vmax.f32 %v417, 0.0
    %v505 = vmax.f32 %v466, 0.0
    %v506 = vmax.f32 %v420, 0.0
    %v507 = vmax.f32 %v469, 0.0
    %v508 = vmax.f32 %v422, 0.0
    %v509 = vmax.f32 %v471, 0.0
    %v510 = vmax.f32 %v425, 0.0
    %v511 = vmax.f32 %v474, 0.0
    %v512 = vmax.f32 %v427, 0.0
    %v513 = vmax.f32 %v476, 0.0
    %v514 = vmax.f32 %v430, 0.0
    %v515 = vmax.f32 %v479, 0.0
    %v516 = vmax.f32 %v432, 0.0
    %v517 = vmax.f32 %v481, 0.0
    %v518 = vmax.f32 %v435, 0.0
    %v519 = vmax.f32 %v484, 0.0
    %v520 = vmax.f32 %v437, 0.0
    %v521 = vmax.f32 %v486, 0.0
    %v522 = vmax.f32 %v440, 0.0
    %v523 = vmax.f32 %v489, 0.0
    %v524 = vmax.f32 %v442, 0.0
    %v525 = vmax.f32 %v491, 0.0
    %v526 = vmax.f32 %v445, 0.0
    %v527 = vmax.f32 %v494, 0.0
    %v528 = vmax.f32 %v447, 0.0
    %v529 = vmax.f32 %v496, 0.0
    %v530 = vpack.c.bf16 %v500, %v498
    %v531 = vpack.c.bf16 %v501, %v499
    %v532 = vpack.c.bf16 %v504, %v502
    %v533 = vpack.c.bf16 %v505, %v503
    %v534 = vpack.c.bf16 %v508, %v506
    %v535 = vpack.c.bf16 %v509, %v507
    %v536 = vpack.c.bf16 %v512, %v510
    %v537 = vpack.c.bf16 %v513, %v511
    %v538 = vpack.c.bf16 %v516, %v514
    %v539 = vpack.c.bf16 %v517, %v515
    %v540 = vpack.c.bf16 %v520, %v518
    %v541 = vpack.c.bf16 %v521, %v519
    %v542 = vpack.c.bf16 %v524, %v522
    %v543 = vpack.c.bf16 %v525, %v523
    %v544 = vpack.c.bf16 %v528, %v526
    %v545 = vpack.c.bf16 %v529, %v527
    %v546 = vld [vmem:[#allocation11] sm:$0xf]
    %v547 = vld [vmem:[#allocation11 + $0x4] sm:$0xf]
    %v548 = vld [vmem:[#allocation11 + $0x8] sm:$0xf]
    %v549 = vld [vmem:[#allocation11 + $0xc] sm:$0xf]
    %v550 = vld [vmem:[#allocation11 + $0x10] sm:$0xf]
    %v551 = vld [vmem:[#allocation11 + $0x14] sm:$0xf]
    %v552 = vld [vmem:[#allocation11 + $0x18] sm:$0xf]
    %v553 = vld [vmem:[#allocation11 + $0x1c] sm:$0xf]
    %v554 = vld [vmem:[#allocation11 + $0x20] sm:$0xf]
    %v555 = vld [vmem:[#allocation11 + $0x24] sm:$0xf]
    %v556 = vld [vmem:[#allocation11 + $0x28] sm:$0xf]
    %v557 = vld [vmem:[#allocation11 + $0x2c] sm:$0xf]
    %v558 = vld [vmem:[#allocation11 + $0x30] sm:$0xf]
    %v559 = vld [vmem:[#allocation11 + $0x34] sm:$0xf]
    %v560 = vld [vmem:[#allocation11 + $0x38] sm:$0xf]
    %v561 = vld [vmem:[#allocation11 + $0x3c] sm:$0xf]
    %v562 = vld [vmem:[#allocation11 + $0x40] sm:$0xf]
    %v563 = vld [vmem:[#allocation11 + $0x44] sm:$0xf]
    %v564 = vld [vmem:[#allocation11 + $0x48] sm:$0xf]
    %v565 = vld [vmem:[#allocation11 + $0x4c] sm:$0xf]
    %v566 = vld [vmem:[#allocation11 + $0x50] sm:$0xf]
    %v567 = vld [vmem:[#allocation11 + $0x54] sm:$0xf]
    %v568 = vld [vmem:[#allocation11 + $0x58] sm:$0xf]
    %v569 = vld [vmem:[#allocation11 + $0x5c] sm:$0xf]
    %v570 = vld [vmem:[#allocation11 + $0x60] sm:$0xf]
    %v571 = vld [vmem:[#allocation11 + $0x64] sm:$0xf]
    %v572 = vld [vmem:[#allocation11 + $0x68] sm:$0xf]
    %v573 = vld [vmem:[#allocation11 + $0x6c] sm:$0xf]
    %v574 = vld [vmem:[#allocation11 + $0x70] sm:$0xf]
    %v575 = vld [vmem:[#allocation11 + $0x74] sm:$0xf]
    %v576 = vld [vmem:[#allocation11 + $0x78] sm:$0xf]
    %v577 = vld [vmem:[#allocation11 + $0x7c] sm:$0xf]
    %v578 = vld [vmem:[%s6] sm:$0x1]
    %v580 = vperm.slane %v578, 0
    %v614 = vunpack.c.l.b16 %v546
    %v615 = vunpack.c.l.b16 %v547
    %v616 = vunpack.c.l.b16 %v548
    %v617 = vunpack.c.l.b16 %v549
    %v618 = vunpack.c.l.b16 %v550
    %v619 = vunpack.c.l.b16 %v551
    %v620 = vunpack.c.l.b16 %v552
    %v621 = vunpack.c.l.b16 %v553
    %v622 = vunpack.c.l.b16 %v554
    %v623 = vunpack.c.l.b16 %v555
    %v624 = vunpack.c.l.b16 %v556
    %v625 = vunpack.c.l.b16 %v557
    %v626 = vunpack.c.l.b16 %v558
    %v627 = vunpack.c.l.b16 %v559
    %v628 = vunpack.c.l.b16 %v560
    %v629 = vunpack.c.l.b16 %v561
    %v630 = vunpack.c.l.b16 %v562
    %v631 = vunpack.c.l.b16 %v563
    %v632 = vunpack.c.l.b16 %v564
    %v633 = vunpack.c.l.b16 %v565
    %v634 = vunpack.c.l.b16 %v566
    %v635 = vunpack.c.l.b16 %v567
    %v636 = vunpack.c.l.b16 %v568
    %v637 = vunpack.c.l.b16 %v569
    %v638 = vunpack.c.l.b16 %v570
    %v639 = vunpack.c.l.b16 %v571
    %v640 = vunpack.c.l.b16 %v572
    %v641 = vunpack.c.l.b16 %v573
    %v642 = vunpack.c.l.b16 %v574
    %v643 = vunpack.c.l.b16 %v575
    %v644 = vunpack.c.l.b16 %v576
    %v645 = vunpack.c.l.b16 %v577
    %v646 = vpack.c.b16 %v615, %v614
    %v647 = vpack.c.b16 %v617, %v616
    %v648 = vpack.c.b16 %v619, %v618
    %v649 = vpack.c.b16 %v621, %v620
    %v650 = vpack.c.b16 %v623, %v622
    %v651 = vpack.c.b16 %v625, %v624
    %v652 = vpack.c.b16 %v627, %v626
    %v653 = vpack.c.b16 %v629, %v628
    %v654 = vpack.c.b16 %v631, %v630
    %v655 = vpack.c.b16 %v633, %v632
    %v656 = vpack.c.b16 %v635, %v634
    %v657 = vpack.c.b16 %v637, %v636
    %v658 = vpack.c.b16 %v639, %v638
    %v659 = vpack.c.b16 %v641, %v640
    %v660 = vpack.c.b16 %v643, %v642
    %v661 = vpack.c.b16 %v645, %v644
    %678 = vmatpush.bf16.msra.mxu0 %v653
    %679 = vmatpush.bf16.msra.mxu0 %v652
    %680 = vmatpush.bf16.msra.mxu0 %v651
    %681 = vmatpush.bf16.msra.mxu0 %v650
    %682 = vmatpush.bf16.msra.mxu0 %v649
    %683 = vmatpush.bf16.msra.mxu0 %v648
    %684 = vmatpush.bf16.msra.mxu0 %v647
    %685 = vmatpush.bf16.msra.mxu0 %v646
    %686 = vmatmul.bf16.gmra.mxu0 %v530
    %v687 = vpop.f32.mrf.mxu0
    %v688 = vadd.f32 %v580, %v687
    %v689 = vpop.f32.mrf.mxu0
    %v690 = vadd.f32 %v580, %v689
    %691 = vmatmul.bf16.gmra.mxu0 %v532
    %v692 = vpop.f32.mrf.mxu0
    %v693 = vadd.f32 %v580, %v692
    %v694 = vpop.f32.mrf.mxu0
    %v695 = vadd.f32 %v580, %v694
    %696 = vmatmul.bf16.gmra.mxu0 %v534
    %v697 = vpop.f32.mrf.mxu0
    %v698 = vadd.f32 %v580, %v697
    %v699 = vpop.f32.mrf.mxu0
    %v700 = vadd.f32 %v580, %v699
    %701 = vmatmul.bf16.gmra.mxu0 %v536
    %v702 = vpop.f32.mrf.mxu0
    %v703 = vadd.f32 %v580, %v702
    %v704 = vpop.f32.mrf.mxu0
    %v705 = vadd.f32 %v580, %v704
    %706 = vmatmul.bf16.gmra.mxu0 %v538
    %v707 = vpop.f32.mrf.mxu0
    %v708 = vadd.f32 %v580, %v707
    %v709 = vpop.f32.mrf.mxu0
    %v710 = vadd.f32 %v580, %v709
    %711 = vmatmul.bf16.gmra.mxu0 %v540
    %v712 = vpop.f32.mrf.mxu0
    %v713 = vadd.f32 %v580, %v712
    %v714 = vpop.f32.mrf.mxu0
    %v715 = vadd.f32 %v580, %v714
    %716 = vmatmul.bf16.gmra.mxu0 %v542
    %v717 = vpop.f32.mrf.mxu0
    %v718 = vadd.f32 %v580, %v717
    %v719 = vpop.f32.mrf.mxu0
    %v720 = vadd.f32 %v580, %v719
    %721 = vmatmul.bf16.gmra.mxu0 %v544
    %v722 = vpop.f32.mrf.mxu0
    %v723 = vadd.f32 %v580, %v722
    %v724 = vpop.f32.mrf.mxu0
    %v725 = vadd.f32 %v580, %v724
    %726 = vdwg.mxu0
    %727 = vmatpush.bf16.msra.mxu0 %v661
    %728 = vmatpush.bf16.msra.mxu0 %v660
    %729 = vmatpush.bf16.msra.mxu0 %v659
    %730 = vmatpush.bf16.msra.mxu0 %v658
    %731 = vmatpush.bf16.msra.mxu0 %v657
    %732 = vmatpush.bf16.msra.mxu0 %v656
    %733 = vmatpush.bf16.msra.mxu0 %v655
    %734 = vmatpush.bf16.msra.mxu0 %v654
    %735 = vmatmul.bf16.gmra.mxu0 %v531
    %v736 = vpop.f32.mrf.mxu0
    %v737 = vadd.f32 %v688, %v736
    %v738 = vpop.f32.mrf.mxu0
    %v739 = vadd.f32 %v690, %v738
    %740 = vmatmul.bf16.gmra.mxu0 %v533
    %v741 = vpop.f32.mrf.mxu0
    %v742 = vadd.f32 %v693, %v741
    %v743 = vpop.f32.mrf.mxu0
    %v744 = vadd.f32 %v695, %v743
    %745 = vmatmul.bf16.gmra.mxu0 %v535
    %v746 = vpop.f32.mrf.mxu0
    %v747 = vadd.f32 %v698, %v746
    %v748 = vpop.f32.mrf.mxu0
    %v749 = vadd.f32 %v700, %v748
    %750 = vmatmul.bf16.gmra.mxu0 %v537
    %v751 = vpop.f32.mrf.mxu0
    %v752 = vadd.f32 %v703, %v751
    %v753 = vpop.f32.mrf.mxu0
    %v754 = vadd.f32 %v705, %v753
    %755 = vmatmul.bf16.gmra.mxu0 %v539
    %v756 = vpop.f32.mrf.mxu0
    %v757 = vadd.f32 %v708, %v756
    %v758 = vpop.f32.mrf.mxu0
    %v759 = vadd.f32 %v710, %v758
    %760 = vmatmul.bf16.gmra.mxu0 %v541
    %v761 = vpop.f32.mrf.mxu0
    %v762 = vadd.f32 %v713, %v761
    %v763 = vpop.f32.mrf.mxu0
    %v764 = vadd.f32 %v715, %v763
    %765 = vmatmul.bf16.gmra.mxu0 %v543
    %v766 = vpop.f32.mrf.mxu0
    %v767 = vadd.f32 %v718, %v766
    %v768 = vpop.f32.mrf.mxu0
    %v769 = vadd.f32 %v720, %v768
    %770 = vmatmul.bf16.gmra.mxu0 %v545
    %v771 = vpop.f32.mrf.mxu0
    %v772 = vadd.f32 %v723, %v771
    %v773 = vpop.f32.mrf.mxu0
    %v774 = vadd.f32 %v725, %v773
    %775 = vdwg.mxu0
    %v776 = vmax.f32 %v737, 0.0
    %v777 = vmax.f32 %v739, 0.0
    %v778 = vmax.f32 %v742, 0.0
    %v779 = vmax.f32 %v744, 0.0
    %v780 = vmax.f32 %v747, 0.0
    %v781 = vmax.f32 %v749, 0.0
    %v782 = vmax.f32 %v752, 0.0
    %v783 = vmax.f32 %v754, 0.0
    %v784 = vmax.f32 %v757, 0.0
    %v785 = vmax.f32 %v759, 0.0
    %v786 = vmax.f32 %v762, 0.0
    %v787 = vmax.f32 %v764, 0.0
    %v788 = vmax.f32 %v767, 0.0
    %v789 = vmax.f32 %v769, 0.0
    %v790 = vmax.f32 %v772, 0.0
    %v791 = vmax.f32 %v774, 0.0
    %v792 = vpack.c.bf16 %v777, %v776
    %v793 = vpack.c.bf16 %v779, %v778
    %v794 = vpack.c.bf16 %v781, %v780
    %v795 = vpack.c.bf16 %v783, %v782
    %v796 = vpack.c.bf16 %v785, %v784
    %v797 = vpack.c.bf16 %v787, %v786
    %v798 = vpack.c.bf16 %v789, %v788
    %v799 = vpack.c.bf16 %v791, %v790
    %s800 = scalar_lea.vmem [#allocation7], 128
    %v801 = vld [vmem:[%s800] sm:$0xff]
    %v802 = vld [vmem:[%s800 + $0x8] sm:$0xff]
    %v803 = vld [vmem:[%s800 + $0x10] sm:$0xff]
    %v804 = vld [vmem:[%s800 + $0x18] sm:$0xff]
    %v805 = vld [vmem:[%s800 + $0x20] sm:$0xff]
    %v806 = vld [vmem:[%s800 + $0x28] sm:$0xff]
    %v807 = vld [vmem:[%s800 + $0x30] sm:$0xff]
    %v808 = vld [vmem:[%s800 + $0x38] sm:$0xff]
    %v809 = vld [vmem:[%s800 + $0x40] sm:$0xff]
    %v810 = vld [vmem:[%s800 + $0x48] sm:$0xff]
    %v811 = vld [vmem:[%s800 + $0x50] sm:$0xff]
    %v812 = vld [vmem:[%s800 + $0x58] sm:$0xff]
    %v813 = vld [vmem:[%s800 + $0x60] sm:$0xff]
    %v814 = vld [vmem:[%s800 + $0x68] sm:$0xff]
    %v815 = vld [vmem:[%s800 + $0x70] sm:$0xff]
    %v816 = vld [vmem:[%s800 + $0x78] sm:$0xff]
    %817 = vmatpush.bf16.msra.mxu0 %v799
    %818 = vmatpush.bf16.msra.mxu0 %v798
    %819 = vmatpush.bf16.msra.mxu0 %v797
    %820 = vmatpush.bf16.msra.mxu0 %v796
    %821 = vmatpush.bf16.msra.mxu0 %v795
    %822 = vmatpush.bf16.msra.mxu0 %v794
    %823 = vmatpush.bf16.msra.mxu0 %v793
    %824 = vmatpush.bf16.msra.mxu0 %v792
    %825 = vmatmul.bf16.gmra.mxu0 %v225
    %v826 = vpop.f32.mrf.mxu0
    %v827 = vadd.f32 %v801, %v826
    %v828 = vpop.f32.mrf.mxu0
    %v829 = vadd.f32 %v802, %v828
    %830 = vmatmul.bf16.gmra.mxu0 %v226
    %v831 = vpop.f32.mrf.mxu0
    %v832 = vadd.f32 %v803, %v831
    %v833 = vpop.f32.mrf.mxu0
    %v834 = vadd.f32 %v804, %v833
    %835 = vmatmul.bf16.gmra.mxu0 %v227
    %v836 = vpop.f32.mrf.mxu0
    %v837 = vadd.f32 %v805, %v836
    %v838 = vpop.f32.mrf.mxu0
    %v839 = vadd.f32 %v806, %v838
    %840 = vmatmul.bf16.gmra.mxu0 %v228
    %v841 = vpop.f32.mrf.mxu0
    %v842 = vadd.f32 %v807, %v841
    %v843 = vpop.f32.mrf.mxu0
    %v844 = vadd.f32 %v808, %v843
    %845 = vmatmul.bf16.gmra.mxu0 %v229
    %v846 = vpop.f32.mrf.mxu0
    %v847 = vadd.f32 %v809, %v846
    %v848 = vpop.f32.mrf.mxu0
    %v849 = vadd.f32 %v810, %v848
    %850 = vmatmul.bf16.gmra.mxu0 %v230
    %v851 = vpop.f32.mrf.mxu0
    %v852 = vadd.f32 %v811, %v851
    %v853 = vpop.f32.mrf.mxu0
    %v854 = vadd.f32 %v812, %v853
    %855 = vmatmul.bf16.gmra.mxu0 %v231
    %v856 = vpop.f32.mrf.mxu0
    %v857 = vadd.f32 %v813, %v856
    %v858 = vpop.f32.mrf.mxu0
    %v859 = vadd.f32 %v814, %v858
    %860 = vmatmul.bf16.gmra.mxu0 %v232
    %v861 = vpop.f32.mrf.mxu0
    %v862 = vadd.f32 %v815, %v861
    %v863 = vpop.f32.mrf.mxu0
    %v864 = vadd.f32 %v816, %v863
    %865 = vdwg.mxu0
    %v866 = vpack.c.bf16 %v829, %v827
    %v867 = vpack.c.bf16 %v834, %v832
    %v868 = vpack.c.bf16 %v839, %v837
    %v869 = vpack.c.bf16 %v844, %v842
    %v870 = vpack.c.bf16 %v849, %v847
    %v871 = vpack.c.bf16 %v854, %v852
    %v872 = vpack.c.bf16 %v859, %v857
    %v873 = vpack.c.bf16 %v864, %v862
    %s874 = scalar_lea.vmem [#allocation8], 128
    %v875 = vld [vmem:[%s874] sm:$0xff]
    %v876 = vld [vmem:[%s874 + $0x8] sm:$0xff]
    %v877 = vld [vmem:[%s874 + $0x10] sm:$0xff]
    %v878 = vld [vmem:[%s874 + $0x18] sm:$0xff]
    %v879 = vld [vmem:[%s874 + $0x20] sm:$0xff]
    %v880 = vld [vmem:[%s874 + $0x28] sm:$0xff]
    %v881 = vld [vmem:[%s874 + $0x30] sm:$0xff]
    %v882 = vld [vmem:[%s874 + $0x38] sm:$0xff]
    %v883 = vld [vmem:[%s874 + $0x40] sm:$0xff]
    %v884 = vld [vmem:[%s874 + $0x48] sm:$0xff]
    %v885 = vld [vmem:[%s874 + $0x50] sm:$0xff]
    %v886 = vld [vmem:[%s874 + $0x58] sm:$0xff]
    %v887 = vld [vmem:[%s874 + $0x60] sm:$0xff]
    %v888 = vld [vmem:[%s874 + $0x68] sm:$0xff]
    %v889 = vld [vmem:[%s874 + $0x70] sm:$0xff]
    %v890 = vld [vmem:[%s874 + $0x78] sm:$0xff]
    %s891 = scalar_lea.vmem [#allocation10], 2
    %v892 = vld [vmem:[%s891] sm:$0x3]
    %v894 = vperm.slane %v892, 0
    %v895 = vperm.slane %v892, 1
    %v914 = vunpack.c.l.b16 %v875
    %v915 = vunpack.c.h.b16 %v875
    %v916 = vunpack.c.l.b16 %v876
    %v917 = vunpack.c.h.b16 %v876
    %v918 = vunpack.c.l.b16 %v877
    %v919 = vunpack.c.h.b16 %v877
    %v920 = vunpack.c.l.b16 %v878
    %v921 = vunpack.c.h.b16 %v878
    %v922 = vunpack.c.l.b16 %v879
    %v923 = vunpack.c.h.b16 %v879
    %v924 = vunpack.c.l.b16 %v880
    %v925 = vunpack.c.h.b16 %v880
    %v926 = vunpack.c.l.b16 %v881
    %v927 = vunpack.c.h.b16 %v881
    %v928 = vunpack.c.l.b16 %v882
    %v929 = vunpack.c.h.b16 %v882
    %v930 = vunpack.c.l.b16 %v883
    %v931 = vunpack.c.h.b16 %v883
    %v932 = vunpack.c.l.b16 %v884
    %v933 = vunpack.c.h.b16 %v884
    %v934 = vunpack.c.l.b16 %v885
    %v935 = vunpack.c.h.b16 %v885
    %v936 = vunpack.c.l.b16 %v886
    %v937 = vunpack.c.h.b16 %v886
    %v938 = vunpack.c.l.b16 %v887
    %v939 = vunpack.c.h.b16 %v887
    %v940 = vunpack.c.l.b16 %v888
    %v941 = vunpack.c.h.b16 %v888
    %v942 = vunpack.c.l.b16 %v889
    %v943 = vunpack.c.h.b16 %v889
    %v944 = vunpack.c.l.b16 %v890
    %v945 = vunpack.c.h.b16 %v890
    %v946 = vpack.c.b16 %v916, %v914
    %v947 = vpack.c.b16 %v917, %v915
    %v948 = vpack.c.b16 %v920, %v918
    %v949 = vpack.c.b16 %v921, %v919
    %v950 = vpack.c.b16 %v924, %v922
    %v951 = vpack.c.b16 %v925, %v923
    %v952 = vpack.c.b16 %v928, %v926
    %v953 = vpack.c.b16 %v929, %v927
    %v954 = vpack.c.b16 %v932, %v930
    %v955 = vpack.c.b16 %v933, %v931
    %v956 = vpack.c.b16 %v936, %v934
    %v957 = vpack.c.b16 %v937, %v935
    %v958 = vpack.c.b16 %v940, %v938
    %v959 = vpack.c.b16 %v941, %v939
    %v960 = vpack.c.b16 %v944, %v942
    %v961 = vpack.c.b16 %v945, %v943
    %978 = vmatpush.bf16.msra.mxu0 %v960
    %979 = vmatpush.bf16.msra.mxu0 %v958
    %980 = vmatpush.bf16.msra.mxu0 %v956
    %981 = vmatpush.bf16.msra.mxu0 %v954
    %982 = vmatpush.bf16.msra.mxu0 %v952
    %983 = vmatpush.bf16.msra.mxu0 %v950
    %984 = vmatpush.bf16.msra.mxu0 %v948
    %985 = vmatpush.bf16.msra.mxu0 %v946
    %986 = vmatmul.bf16.gmra.mxu0 %v866
    %v987 = vpop.f32.mrf.mxu0
    %v988 = vadd.f32 %v894, %v987
    %v989 = vpop.f32.mrf.mxu0
    %v990 = vadd.f32 %v894, %v989
    %991 = vmatmul.bf16.gmra.mxu0 %v867
    %v992 = vpop.f32.mrf.mxu0
    %v993 = vadd.f32 %v894, %v992
    %v994 = vpop.f32.mrf.mxu0
    %v995 = vadd.f32 %v894, %v994
    %996 = vmatmul.bf16.gmra.mxu0 %v868
    %v997 = vpop.f32.mrf.mxu0
    %v998 = vadd.f32 %v894, %v997
    %v999 = vpop.f32.mrf.mxu0
    %v1000 = vadd.f32 %v894, %v999
    %1001 = vmatmul.bf16.gmra.mxu0 %v869
    %v1002 = vpop.f32.mrf.mxu0
    %v1003 = vadd.f32 %v894, %v1002
    %v1004 = vpop.f32.mrf.mxu0
    %v1005 = vadd.f32 %v894, %v1004
    %1006 = vmatmul.bf16.gmra.mxu0 %v870
    %v1007 = vpop.f32.mrf.mxu0
    %v1008 = vadd.f32 %v894, %v1007
    %v1009 = vpop.f32.mrf.mxu0
    %v1010 = vadd.f32 %v894, %v1009
    %1011 = vmatmul.bf16.gmra.mxu0 %v871
    %v1012 = vpop.f32.mrf.mxu0
    %v1013 = vadd.f32 %v894, %v1012
    %v1014 = vpop.f32.mrf.mxu0
    %v1015 = vadd.f32 %v894, %v1014
    %1016 = vmatmul.bf16.gmra.mxu0 %v872
    %v1017 = vpop.f32.mrf.mxu0
    %v1018 = vadd.f32 %v894, %v1017
    %v1019 = vpop.f32.mrf.mxu0
    %v1020 = vadd.f32 %v894, %v1019
    %1021 = vmatmul.bf16.gmra.mxu0 %v873
    %v1022 = vpop.f32.mrf.mxu0
    %v1023 = vadd.f32 %v894, %v1022
    %v1024 = vpop.f32.mrf.mxu0
    %v1025 = vadd.f32 %v894, %v1024
    %1026 = vdwg.mxu0
    %1027 = vmatpush.bf16.msra.mxu0 %v961
    %1028 = vmatpush.bf16.msra.mxu0 %v959
    %1029 = vmatpush.bf16.msra.mxu0 %v957
    %1030 = vmatpush.bf16.msra.mxu0 %v955
    %1031 = vmatpush.bf16.msra.mxu0 %v953
    %1032 = vmatpush.bf16.msra.mxu0 %v951
    %1033 = vmatpush.bf16.msra.mxu0 %v949
    %1034 = vmatpush.bf16.msra.mxu0 %v947
    %1035 = vmatmul.bf16.gmra.mxu0 %v866
    %v1036 = vpop.f32.mrf.mxu0
    %v1037 = vadd.f32 %v895, %v1036
    %v1038 = vpop.f32.mrf.mxu0
    %v1039 = vadd.f32 %v895, %v1038
    %1040 = vmatmul.bf16.gmra.mxu0 %v867
    %v1041 = vpop.f32.mrf.mxu0
    %v1042 = vadd.f32 %v895, %v1041
    %v1043 = vpop.f32.mrf.mxu0
    %v1044 = vadd.f32 %v895, %v1043
    %1045 = vmatmul.bf16.gmra.mxu0 %v868
    %v1046 = vpop.f32.mrf.mxu0
    %v1047 = vadd.f32 %v895, %v1046
    %v1048 = vpop.f32.mrf.mxu0
    %v1049 = vadd.f32 %v895, %v1048
    %1050 = vmatmul.bf16.gmra.mxu0 %v869
    %v1051 = vpop.f32.mrf.mxu0
    %v1052 = vadd.f32 %v895, %v1051
    %v1053 = vpop.f32.mrf.mxu0
    %v1054 = vadd.f32 %v895, %v1053
    %1055 = vmatmul.bf16.gmra.mxu0 %v870
    %v1056 = vpop.f32.mrf.mxu0
    %v1057 = vadd.f32 %v895, %v1056
    %v1058 = vpop.f32.mrf.mxu0
    %v1059 = vadd.f32 %v895, %v1058
    %1060 = vmatmul.bf16.gmra.mxu0 %v871
    %v1061 = vpop.f32.mrf.mxu0
    %v1062 = vadd.f32 %v895, %v1061
    %v1063 = vpop.f32.mrf.mxu0
    %v1064 = vadd.f32 %v895, %v1063
    %1065 = vmatmul.bf16.gmra.mxu0 %v872
    %v1066 = vpop.f32.mrf.mxu0
    %v1067 = vadd.f32 %v895, %v1066
    %v1068 = vpop.f32.mrf.mxu0
    %v1069 = vadd.f32 %v895, %v1068
    %1070 = vmatmul.bf16.gmra.mxu0 %v873
    %v1071 = vpop.f32.mrf.mxu0
    %v1072 = vadd.f32 %v895, %v1071
    %v1073 = vpop.f32.mrf.mxu0
    %v1074 = vadd.f32 %v895, %v1073
    %1075 = vdwg.mxu0
    %v1076 = vmax.f32 %v988, 0.0
    %v1077 = vmax.f32 %v1037, 0.0
    %v1078 = vmax.f32 %v990, 0.0
    %v1079 = vmax.f32 %v1039, 0.0
    %v1080 = vmax.f32 %v993, 0.0
    %v1081 = vmax.f32 %v1042, 0.0
    %v1082 = vmax.f32 %v995, 0.0
    %v1083 = vmax.f32 %v1044, 0.0
    %v1084 = vmax.f32 %v998, 0.0
    %v1085 = vmax.f32 %v1047, 0.0
    %v1086 = vmax.f32 %v1000, 0.0
    %v1087 = vmax.f32 %v1049, 0.0
    %v1088 = vmax.f32 %v1003, 0.0
    %v1089 = vmax.f32 %v1052, 0.0
    %v1090 = vmax.f32 %v1005, 0.0
    %v1091 = vmax.f32 %v1054, 0.0
    %v1092 = vmax.f32 %v1008, 0.0
    %v1093 = vmax.f32 %v1057, 0.0
    %v1094 = vmax.f32 %v1010, 0.0
    %v1095 = vmax.f32 %v1059, 0.0
    %v1096 = vmax.f32 %v1013, 0.0
    %v1097 = vmax.f32 %v1062, 0.0
    %v1098 = vmax.f32 %v1015, 0.0
    %v1099 = vmax.f32 %v1064, 0.0
    %v1100 = vmax.f32 %v1018, 0.0
    %v1101 = vmax.f32 %v1067, 0.0
    %v1102 = vmax.f32 %v1020, 0.0
    %v1103 = vmax.f32 %v1069, 0.0
    %v1104 = vmax.f32 %v1023, 0.0
    %v1105 = vmax.f32 %v1072, 0.0
    %v1106 = vmax.f32 %v1025, 0.0
    %v1107 = vmax.f32 %v1074, 0.0
    %v1108 = vpack.c.bf16 %v1078, %v1076
    %v1109 = vpack.c.bf16 %v1079, %v1077
    %v1110 = vpack.c.bf16 %v1082, %v1080
    %v1111 = vpack.c.bf16 %v1083, %v1081
    %v1112 = vpack.c.bf16 %v1086, %v1084
    %v1113 = vpack.c.bf16 %v1087, %v1085
    %v1114 = vpack.c.bf16 %v1090, %v1088
    %v1115 = vpack.c.bf16 %v1091, %v1089
    %v1116 = vpack.c.bf16 %v1094, %v1092
    %v1117 = vpack.c.bf16 %v1095, %v1093
    %v1118 = vpack.c.bf16 %v1098, %v1096
    %v1119 = vpack.c.bf16 %v1099, %v1097
    %v1120 = vpack.c.bf16 %v1102, %v1100
    %v1121 = vpack.c.bf16 %v1103, %v1101
    %v1122 = vpack.c.bf16 %v1106, %v1104
    %v1123 = vpack.c.bf16 %v1107, %v1105
    %s1124 = scalar_lea.vmem [#allocation11], 128
    %v1125 = vld [vmem:[%s1124] sm:$0xf]
    %v1126 = vld [vmem:[%s1124 + $0x4] sm:$0xf]
    %v1127 = vld [vmem:[%s1124 + $0x8] sm:$0xf]
    %v1128 = vld [vmem:[%s1124 + $0xc] sm:$0xf]
    %v1129 = vld [vmem:[%s1124 + $0x10] sm:$0xf]
    %v1130 = vld [vmem:[%s1124 + $0x14] sm:$0xf]
    %v1131 = vld [vmem:[%s1124 + $0x18] sm:$0xf]
    %v1132 = vld [vmem:[%s1124 + $0x1c] sm:$0xf]
    %v1133 = vld [vmem:[%s1124 + $0x20] sm:$0xf]
    %v1134 = vld [vmem:[%s1124 + $0x24] sm:$0xf]
    %v1135 = vld [vmem:[%s1124 + $0x28] sm:$0xf]
    %v1136 = vld [vmem:[%s1124 + $0x2c] sm:$0xf]
    %v1137 = vld [vmem:[%s1124 + $0x30] sm:$0xf]
    %v1138 = vld [vmem:[%s1124 + $0x34] sm:$0xf]
    %v1139 = vld [vmem:[%s1124 + $0x38] sm:$0xf]
    %v1140 = vld [vmem:[%s1124 + $0x3c] sm:$0xf]
    %v1141 = vld [vmem:[%s1124 + $0x40] sm:$0xf]
    %v1142 = vld [vmem:[%s1124 + $0x44] sm:$0xf]
    %v1143 = vld [vmem:[%s1124 + $0x48] sm:$0xf]
    %v1144 = vld [vmem:[%s1124 + $0x4c] sm:$0xf]
    %v1145 = vld [vmem:[%s1124 + $0x50] sm:$0xf]
    %v1146 = vld [vmem:[%s1124 + $0x54] sm:$0xf]
    %v1147 = vld [vmem:[%s1124 + $0x58] sm:$0xf]
    %v1148 = vld [vmem:[%s1124 + $0x5c] sm:$0xf]
    %v1149 = vld [vmem:[%s1124 + $0x60] sm:$0xf]
    %v1150 = vld [vmem:[%s1124 + $0x64] sm:$0xf]
    %v1151 = vld [vmem:[%s1124 + $0x68] sm:$0xf]
    %v1152 = vld [vmem:[%s1124 + $0x6c] sm:$0xf]
    %v1153 = vld [vmem:[%s1124 + $0x70] sm:$0xf]
    %v1154 = vld [vmem:[%s1124 + $0x74] sm:$0xf]
    %v1155 = vld [vmem:[%s1124 + $0x78] sm:$0xf]
    %v1156 = vld [vmem:[%s1124 + $0x7c] sm:$0xf]
    %s1157 = scalar_lea.vmem %s6, 1
    %v1158 = vld [vmem:[%s1157] sm:$0x1]
    %v1160 = vperm.slane %v1158, 0
    %v1194 = vunpack.c.l.b16 %v1125
    %v1195 = vunpack.c.l.b16 %v1126
    %v1196 = vunpack.c.l.b16 %v1127
    %v1197 = vunpack.c.l.b16 %v1128
    %v1198 = vunpack.c.l.b16 %v1129
    %v1199 = vunpack.c.l.b16 %v1130
    %v1200 = vunpack.c.l.b16 %v1131
    %v1201 = vunpack.c.l.b16 %v1132
    %v1202 = vunpack.c.l.b16 %v1133
    %v1203 = vunpack.c.l.b16 %v1134
    %v1204 = vunpack.c.l.b16 %v1135
    %v1205 = vunpack.c.l.b16 %v1136
    %v1206 = vunpack.c.l.b16 %v1137
    %v1207 = vunpack.c.l.b16 %v1138
    %v1208 = vunpack.c.l.b16 %v1139
    %v1209 = vunpack.c.l.b16 %v1140
    %v1210 = vunpack.c.l.b16 %v1141
    %v1211 = vunpack.c.l.b16 %v1142
    %v1212 = vunpack.c.l.b16 %v1143
    %v1213 = vunpack.c.l.b16 %v1144
    %v1214 = vunpack.c.l.b16 %v1145
    %v1215 = vunpack.c.l.b16 %v1146
    %v1216 = vunpack.c.l.b16 %v1147
    %v1217 = vunpack.c.l.b16 %v1148
    %v1218 = vunpack.c.l.b16 %v1149
    %v1219 = vunpack.c.l.b16 %v1150
    %v1220 = vunpack.c.l.b16 %v1151
    %v1221 = vunpack.c.l.b16 %v1152
    %v1222 = vunpack.c.l.b16 %v1153
    %v1223 = vunpack.c.l.b16 %v1154
    %v1224 = vunpack.c.l.b16 %v1155
    %v1225 = vunpack.c.l.b16 %v1156
    %v1226 = vpack.c.b16 %v1195, %v1194
    %v1227 = vpack.c.b16 %v1197, %v1196
    %v1228 = vpack.c.b16 %v1199, %v1198
    %v1229 = vpack.c.b16 %v1201, %v1200
    %v1230 = vpack.c.b16 %v1203, %v1202
    %v1231 = vpack.c.b16 %v1205, %v1204
    %v1232 = vpack.c.b16 %v1207, %v1206
    %v1233 = vpack.c.b16 %v1209, %v1208
    %v1234 = vpack.c.b16 %v1211, %v1210
    %v1235 = vpack.c.b16 %v1213, %v1212
    %v1236 = vpack.c.b16 %v1215, %v1214
    %v1237 = vpack.c.b16 %v1217, %v1216
    %v1238 = vpack.c.b16 %v1219, %v1218
    %v1239 = vpack.c.b16 %v1221, %v1220
    %v1240 = vpack.c.b16 %v1223, %v1222
    %v1241 = vpack.c.b16 %v1225, %v1224
    %1258 = vmatpush.bf16.msra.mxu0 %v1233
    %1259 = vmatpush.bf16.msra.mxu0 %v1232
    %1260 = vmatpush.bf16.msra.mxu0 %v1231
    %1261 = vmatpush.bf16.msra.mxu0 %v1230
    %1262 = vmatpush.bf16.msra.mxu0 %v1229
    %1263 = vmatpush.bf16.msra.mxu0 %v1228
    %1264 = vmatpush.bf16.msra.mxu0 %v1227
    %1265 = vmatpush.bf16.msra.mxu0 %v1226
    %1266 = vmatmul.bf16.gmra.mxu0 %v1108
    %v1267 = vpop.f32.mrf.mxu0
    %v1268 = vadd.f32 %v1160, %v1267
    %v1269 = vpop.f32.mrf.mxu0
    %v1270 = vadd.f32 %v1160, %v1269
    %1271 = vmatmul.bf16.gmra.mxu0 %v1110
    %v1272 = vpop.f32.mrf.mxu0
    %v1273 = vadd.f32 %v1160, %v1272
    %v1274 = vpop.f32.mrf.mxu0
    %v1275 = vadd.f32 %v1160, %v1274
    %1276 = vmatmul.bf16.gmra.mxu0 %v1112
    %v1277 = vpop.f32.mrf.mxu0
    %v1278 = vadd.f32 %v1160, %v1277
    %v1279 = vpop.f32.mrf.mxu0
    %v1280 = vadd.f32 %v1160, %v1279
    %1281 = vmatmul.bf16.gmra.mxu0 %v1114
    %v1282 = vpop.f32.mrf.mxu0
    %v1283 = vadd.f32 %v1160, %v1282
    %v1284 = vpop.f32.mrf.mxu0
    %v1285 = vadd.f32 %v1160, %v1284
    %1286 = vmatmul.bf16.gmra.mxu0 %v1116
    %v1287 = vpop.f32.mrf.mxu0
    %v1288 = vadd.f32 %v1160, %v1287
    %v1289 = vpop.f32.mrf.mxu0
    %v1290 = vadd.f32 %v1160, %v1289
    %1291 = vmatmul.bf16.gmra.mxu0 %v1118
    %v1292 = vpop.f32.mrf.mxu0
    %v1293 = vadd.f32 %v1160, %v1292
    %v1294 = vpop.f32.mrf.mxu0
    %v1295 = vadd.f32 %v1160, %v1294
    %1296 = vmatmul.bf16.gmra.mxu0 %v1120
    %v1297 = vpop.f32.mrf.mxu0
    %v1298 = vadd.f32 %v1160, %v1297
    %v1299 = vpop.f32.mrf.mxu0
    %v1300 = vadd.f32 %v1160, %v1299
    %1301 = vmatmul.bf16.gmra.mxu0 %v1122
    %v1302 = vpop.f32.mrf.mxu0
    %v1303 = vadd.f32 %v1160, %v1302
    %v1304 = vpop.f32.mrf.mxu0
    %v1305 = vadd.f32 %v1160, %v1304
    %1306 = vdwg.mxu0
    %1307 = vmatpush.bf16.msra.mxu0 %v1241
    %1308 = vmatpush.bf16.msra.mxu0 %v1240
    %1309 = vmatpush.bf16.msra.mxu0 %v1239
    %1310 = vmatpush.bf16.msra.mxu0 %v1238
    %1311 = vmatpush.bf16.msra.mxu0 %v1237
    %1312 = vmatpush.bf16.msra.mxu0 %v1236
    %1313 = vmatpush.bf16.msra.mxu0 %v1235
    %1314 = vmatpush.bf16.msra.mxu0 %v1234
    %1315 = vmatmul.bf16.gmra.mxu0 %v1109
    %v1316 = vpop.f32.mrf.mxu0
    %v1317 = vadd.f32 %v1268, %v1316
    %v1318 = vpop.f32.mrf.mxu0
    %v1319 = vadd.f32 %v1270, %v1318
    %1320 = vmatmul.bf16.gmra.mxu0 %v1111
    %v1321 = vpop.f32.mrf.mxu0
    %v1322 = vadd.f32 %v1273, %v1321
    %v1323 = vpop.f32.mrf.mxu0
    %v1324 = vadd.f32 %v1275, %v1323
    %1325 = vmatmul.bf16.gmra.mxu0 %v1113
    %v1326 = vpop.f32.mrf.mxu0
    %v1327 = vadd.f32 %v1278, %v1326
    %v1328 = vpop.f32.mrf.mxu0
    %v1329 = vadd.f32 %v1280, %v1328
    %1330 = vmatmul.bf16.gmra.mxu0 %v1115
    %v1331 = vpop.f32.mrf.mxu0
    %v1332 = vadd.f32 %v1283, %v1331
    %v1333 = vpop.f32.mrf.mxu0
    %v1334 = vadd.f32 %v1285, %v1333
    %1335 = vmatmul.bf16.gmra.mxu0 %v1117
    %v1336 = vpop.f32.mrf.mxu0
    %v1337 = vadd.f32 %v1288, %v1336
    %v1338 = vpop.f32.mrf.mxu0
    %v1339 = vadd.f32 %v1290, %v1338
    %1340 = vmatmul.bf16.gmra.mxu0 %v1119
    %v1341 = vpop.f32.mrf.mxu0
    %v1342 = vadd.f32 %v1293, %v1341
    %v1343 = vpop.f32.mrf.mxu0
    %v1344 = vadd.f32 %v1295, %v1343
    %1345 = vmatmul.bf16.gmra.mxu0 %v1121
    %v1346 = vpop.f32.mrf.mxu0
    %v1347 = vadd.f32 %v1298, %v1346
    %v1348 = vpop.f32.mrf.mxu0
    %v1349 = vadd.f32 %v1300, %v1348
    %1350 = vmatmul.bf16.gmra.mxu0 %v1123
    %v1351 = vpop.f32.mrf.mxu0
    %v1352 = vadd.f32 %v1303, %v1351
    %v1353 = vpop.f32.mrf.mxu0
    %v1354 = vadd.f32 %v1305, %v1353
    %1355 = vdwg.mxu0
    %v1356 = vld [vmem:[#allocation13] sm:$0xff]
    %1357 = vmatpush.msra.mxu0 %v1354
    %1358 = vmatpush.msra.mxu0 %v1352
    %1359 = vmatpush.msra.mxu0 %v1349
    %1360 = vmatpush.msra.mxu0 %v1347
    %1361 = vmatpush.msra.mxu0 %v1344
    %1362 = vmatpush.msra.mxu0 %v1342
    %1363 = vmatpush.msra.mxu0 %v1339
    %1364 = vmatpush.msra.mxu0 %v1337
    %1365 = vmatpush.msra.mxu0 %v1334
    %1366 = vmatpush.msra.mxu0 %v1332
    %1367 = vmatpush.msra.mxu0 %v1329
    %1368 = vmatpush.msra.mxu0 %v1327
    %1369 = vmatpush.msra.mxu0 %v1324
    %1370 = vmatpush.msra.mxu0 %v1322
    %1371 = vmatpush.msra.mxu0 %v1319
    %1372 = vmatpush.msra.mxu0 %v1317
    %1373 = vmatmul.f32.gmra.mxu0 %v1356
    %v1374 = vpop.f32.mrf.mxu0
    %v1375 = vadd.f32 0.0, %v1374
    %1376 = vdwg.mxu0
    %1377 = vst [vmem:[#allocation14] sm:$0xff] %v1375
    // Predicated region
    $region62: #{tpu_custom_call.1} parent=1 // pred_check
      _
    $region63: #{tpu_custom_call.1} parent=1 // pred_check_branch
      %1379 = sbr.rel (0) target = $region65
    $region64: #{tpu_custom_call.1} parent=1 // pred_region
      %1381 = vsyncadd [#allocation4], 0
      %s1383 = sshll.u32 [#allocation14], 4
      %s1384 = int_to_ptr.vmem [resolvable:$true] %s1383
      %s1385 = sshll.u32 %s8, 4
      %s1386 = int_to_ptr.hbm [resolvable:$true] %s1385
      %1388 = dma.vmem_to_hbm [thread:$0]  %s1384, 128, %s1386, [#allocation4]
    $region65: #{tpu_custom_call.1} parent=1 // pred_fallthru
      _
    // Predicated region
    $region66: #{tpu_custom_call.1} parent=1 // pred_check
      _
    $region67: #{tpu_custom_call.1} parent=1 // pred_check_branch
      %1390 = sbr.rel (0) target = $region69
    $region68: #{tpu_custom_call.1} parent=1 // pred_region
      %1392 = dma.done [#allocation4], 128
    $region69: #{tpu_custom_call.1} parent=1 // pred_fallthru
      _
    %1393 = vsyncpa [#allocation3], 1
    %1394 = vsyncpa [#allocation6], 1
    %1395 = vsyncpa [#allocation9], 1
    %1396 = vsyncpa [#allocation12], 1
    %1397 = vsyncpa [#allocation4], 1

</llo_original>
